<compile_context>
chip_gen: v5e
topology: v5e:2x2
jax: 0.10.0
libtpu: 0.0.40
codegen_flags: <defaults>
</compile_context>

<pallas_src>
import functools
import math

import jax
import jax.numpy as jnp
from jax.experimental import pallas as pl
from jax.experimental.pallas import tpu as pltpu


# --------------------------------------------------------------------------- #
# Kernel: identical for the folded and un-folded paths (folding is data prep). #
# --------------------------------------------------------------------------- #
def mlp_kernel(x_ref, w1_ref, b1_ref, w2_ref, b2_ref, o_ref):
    # fc1: h = x @ W1 + b1   (weights already [in, out] / block-diagonal)
    h = jnp.dot(x_ref[...], w1_ref[...], preferred_element_type=jnp.float32)
    h = jnp.maximum(h + b1_ref[...], 0.0)                      # bias + ReLU
    # fc2: y = h @ W2 + b2
    y = jnp.dot(h, w2_ref[...], preferred_element_type=jnp.float32) + b2_ref[...]
    # Sigmoid: exp on the EUP; exact reciprocal keeps the 1e-5 check tight.
    o_ref[...] = pl.reciprocal(1.0 + jnp.exp(-y), approx=False).astype(o_ref.dtype)


def _mlp_pallas(x2d, w1, b1, w2, b2, *, block_rows):
    """sigmoid(relu(x2d @ w1 + b1) @ w2 + b2).

    x2d:[R,K1], w1:[K1,K2], b1:[1,K2], w2:[K2,K3], b2:[1,K3] -> [R,K3] float32.
    """
    R, K1 = x2d.shape
    K2 = w1.shape[1]
    K3 = w2.shape[1]

    if R <= block_rows:
        # Overhead-bound sizes: single no-grid call, everything VMEM-resident.
        return pl.pallas_call(
            mlp_kernel,
            out_shape=jax.ShapeDtypeStruct((R, K3), jnp.float32),
            in_specs=[pl.BlockSpec(memory_space=pltpu.MemorySpace.VMEM)] * 5,
            out_specs=pl.BlockSpec(memory_space=pltpu.MemorySpace.VMEM),
        )(x2d, w1, b1, w2, b2)

    # Throughput path: tile the row axis with a cdiv grid (no jnp.pad / out-slice);
    # Pallas masks the partial last block. Weights/biases stay resident across steps.
    block_rows = max(8, (block_rows // 8) * 8)                  # sublane multiple
    return pl.pallas_call(
        mlp_kernel,
        out_shape=jax.ShapeDtypeStruct((R, K3), jnp.float32),
        grid=(pl.cdiv(R, block_rows),),
        in_specs=[
            pl.BlockSpec((block_rows, K1), lambda i: (i, 0)),   # x row tile
            pl.BlockSpec((K1, K2), lambda i: (0, 0)),           # w1 resident
            pl.BlockSpec((1, K2), lambda i: (0, 0)),            # b1 resident
            pl.BlockSpec((K2, K3), lambda i: (0, 0)),           # w2 resident
            pl.BlockSpec((1, K3), lambda i: (0, 0)),            # b2 resident
        ],
        out_specs=pl.BlockSpec((block_rows, K3), lambda i: (i, 0)),
        compiler_params=pltpu.CompilerParams(
            dimension_semantics=("parallel",)),                 # 2-TC shard on v7x
    )(x2d, w1, b1, w2, b2)


# --------------------------------------------------------------------------- #
# One-time parameter preparation (model-load time).                            #
# --------------------------------------------------------------------------- #
def _block_diag(block, n):
    r, c = block.shape
    out = jnp.zeros((n * r, n * c), block.dtype)
    for k in range(n):                                          # static, tiny
        out = out.at[k * r:(k + 1) * r, k * c:(k + 1) * c].set(block)
    return out


def choose_fold(input_size, output_size, max_fold=64):
    """Batch-fold factor F so folded last dims (F*I, F*O) are multiples of 128."""
    fi = 128 // math.gcd(input_size, 128)
    fo = 128 // math.gcd(output_size, 128)
    f = fi * fo // math.gcd(fi, fo)
    return f if 1 < f <= max_fold else 1


def prepare_params(w1, b1, w2, b2, *, fold=1):
    """Pre-transpose nn.Linear weights ([out,in] -> [in,out]) and, if fold > 1,
    build the fold-way block-diagonal form. Call ONCE at model-load time."""
    H, _ = w1.shape
    O, _ = w2.shape
    w1t, w2t = w1.T, w2.T
    params = {
        "plain": (w1t, b1.reshape(1, H), w2t, b2.reshape(1, O)),
        "folded": None,
    }
    if fold > 1:
        params["folded"] = (
            _block_diag(w1t, fold),                             # [F*I, F*H]
            jnp.tile(b1, fold).reshape(1, fold * H),            # [1,   F*H]
            _block_diag(w2t, fold),                             # [F*H, F*O]
            jnp.tile(b2, fold).reshape(1, fold * O),            # [1,   F*O]
        )
    return params


def text_classifier_forward(x, params, *, fold=1, block_rows=8192):
    """x:[B,I] float32 -> sigmoid(relu(x@W1ᵀ+b1)@W2ᵀ+b2):[B,O] float32."""
    B, I = x.shape
    if fold > 1 and params["folded"] is not None and B % fold == 0:
        w1bd, b1t, w2bd, b2t = params["folded"]
        O = b2t.shape[1] // fold
        xf = x.reshape(B // fold, fold * I)                     # free (contiguous)
        yf = _mlp_pallas(xf, w1bd, b1t, w2bd, b2t,
                         block_rows=max(8, block_rows // fold))
        return yf.reshape(B, O)                                 # free (contiguous)
    # Generic fallback (batch not a multiple of the fold factor).
    w1t, b1r, w2t, b2r = params["plain"]
    return _mlp_pallas(x, w1t, b1r, w2t, b2r, block_rows=block_rows)


def _reference(x, w1, b1, w2, b2):
    h = jnp.maximum(x @ w1.T + b1, 0.0)
    return 1.0 / (1.0 + jnp.exp(-(h @ w2.T + b2)))


if __name__ == "__main__":
    # Shapes consistent with the module: batch=16, input=32, hidden=64, output=8.
    batch, input_size, hidden_size, output_size = 16, 32, 64, 8

    key = jax.random.PRNGKey(0)
    kx, k1, kb1, k2, kb2 = jax.random.split(key, 5)

    x = jax.random.normal(kx, (batch, input_size), dtype=jnp.float32)
    # nn.Linear convention: weight [out, in], bias [out]
    w1 = jax.random.normal(k1, (hidden_size, input_size), dtype=jnp.float32) * 0.1
    b1 = jax.random.normal(kb1, (hidden_size,), dtype=jnp.float32) * 0.1
    w2 = jax.random.normal(k2, (output_size, hidden_size), dtype=jnp.float32) * 0.1
    b2 = jax.random.normal(kb2, (output_size,), dtype=jnp.float32) * 0.1

    fold = choose_fold(input_size, output_size)                 # -> 16 here
    params = prepare_params(w1, b1, w2, b2, fold=fold)          # once, at load time
    fwd = jax.jit(functools.partial(text_classifier_forward, fold=fold))

    # --- small batch: folded, single no-grid call -------------------------------
    out = jax.block_until_ready(fwd(x, params))
    ref = _reference(x, w1, b1, w2, b2)
    assert out.shape == (batch, output_size)
    assert jnp.allclose(out, ref, atol=1e-5, rtol=1e-5), "mismatch (folded small)"

    # --- odd batch: generic un-folded fallback path ------------------------------
    x_odd = jax.random.normal(jax.random.PRNGKey(1), (23, input_size), jnp.float32)
    out_odd = jax.block_until_ready(fwd(x_odd, params))
    ref_odd = _reference(x_odd, w1, b1, w2, b2)
    assert out_odd.shape == (23, output_size)
    assert jnp.allclose(out_odd, ref_odd, atol=1e-5, rtol=1e-5), "mismatch (fallback)"

    # --- large batch: folded grid path, cdiv grid with a masked partial block ----
    big_batch = 30000                                           # 1875 folded rows
    x_big = jax.random.normal(jax.random.PRNGKey(2), (big_batch, input_size),
                              jnp.float32)
    out_big = jax.block_until_ready(fwd(x_big, params))
    ref_big = _reference(x_big, w1, b1, w2, b2)
    assert out_big.shape == (big_batch, output_size)
    assert jnp.allclose(out_big, ref_big, atol=1e-5, rtol=1e-5), "mismatch (grid)"

    print("KERNEL_OK")
</pallas_src>

<mosaic_0001>
module attributes {stable_mosaic.version = 11 : i64} {
  func.func @mlp_kernel(%arg0: memref<1x512xf32, #tpu.memory_space<vmem>>, %arg1: memref<512x1024xf32, #tpu.memory_space<vmem>>, %arg2: memref<1x1024xf32, #tpu.memory_space<vmem>>, %arg3: memref<1024x128xf32, #tpu.memory_space<vmem>>, %arg4: memref<1x128xf32, #tpu.memory_space<vmem>>, %arg5: memref<1x128xf32, #tpu.memory_space<vmem>>) attributes {dimension_semantics = [], scalar_prefetch = 0 : i64, scratch_operands = 0 : i64, tpu.core_type = #tpu.core_type<tc>} {
    %c0 = arith.constant 0 : index
    %c0_0 = arith.constant 0 : index
    %0 = vector.load %arg0[%c0, %c0_0] : memref<1x512xf32, #tpu.memory_space<vmem>>, vector<1x512xf32>
    %c0_1 = arith.constant 0 : index
    %c0_2 = arith.constant 0 : index
    %1 = vector.load %arg1[%c0_1, %c0_2] : memref<512x1024xf32, #tpu.memory_space<vmem>>, vector<512x1024xf32>
    %cst = arith.constant dense<0.000000e+00> : vector<1x1024xf32>
    %2 = tpu.matmul %0, %1, %cst {dimension_numbers = #tpu.dot_dimension_numbers<[1], [0], [0], [1], [0, 0, 1, 1], [], []>} : vector<1x512xf32>, vector<512x1024xf32>, vector<1x1024xf32> -> vector<1x1024xf32>
    %c0_3 = arith.constant 0 : index
    %c0_4 = arith.constant 0 : index
    %3 = vector.load %arg2[%c0_3, %c0_4] : memref<1x1024xf32, #tpu.memory_space<vmem>>, vector<1x1024xf32>
    %4 = arith.addf %2, %3 : vector<1x1024xf32>
    %cst_5 = arith.constant 0.000000e+00 : f32
    %5 = vector.broadcast %cst_5 : f32 to vector<1x1024xf32>
    %6 = arith.maximumf %4, %5 : vector<1x1024xf32>
    %c0_6 = arith.constant 0 : index
    %c0_7 = arith.constant 0 : index
    %7 = vector.load %arg3[%c0_6, %c0_7] : memref<1024x128xf32, #tpu.memory_space<vmem>>, vector<1024x128xf32>
    %cst_8 = arith.constant dense<0.000000e+00> : vector<1x128xf32>
    %8 = tpu.matmul %6, %7, %cst_8 {dimension_numbers = #tpu.dot_dimension_numbers<[1], [0], [0], [1], [0, 0, 1, 1], [], []>} : vector<1x1024xf32>, vector<1024x128xf32>, vector<1x128xf32> -> vector<1x128xf32>
    %c0_9 = arith.constant 0 : index
    %c0_10 = arith.constant 0 : index
    %9 = vector.load %arg4[%c0_9, %c0_10] : memref<1x128xf32, #tpu.memory_space<vmem>>, vector<1x128xf32>
    %10 = arith.addf %8, %9 : vector<1x128xf32>
    %cst_11 = arith.constant 0.000000e+00 : f32
    %11 = vector.broadcast %cst_11 : f32 to vector<1x128xf32>
    %12 = arith.subf %11, %10 : vector<1x128xf32>
    %13 = math.exp %12 : vector<1x128xf32>
    %cst_12 = arith.constant 1.000000e+00 : f32
    %14 = vector.broadcast %cst_12 : f32 to vector<1x128xf32>
    %15 = arith.addf %14, %13 : vector<1x128xf32>
    %16 = tpu.reciprocal %15 : vector<1x128xf32> -> vector<1x128xf32>
    %c0_13 = arith.constant 0 : index
    %c0_14 = arith.constant 0 : index
    %17 = vector.load %arg5[%c0_13, %c0_14] : memref<1x128xf32, #tpu.memory_space<vmem>>, vector<1x128xf32>
    tpu.vector_store %arg5[%c0_13, %c0_14], %16 {strides = array<i32>} : memref<1x128xf32, #tpu.memory_space<vmem>>, vector<1x128xf32>,
    return
  }
}

</mosaic_0001>

<llo_original>
// kernel: text_classifier_forward.1
$region0: #{text_classifier_forward.1}
  #allocation0 [shape = 'u32[]', space=smem, size = 0x4, offset = 0x4, fixed_abs, tag = 'smem constant byte address 0x4 - core index']
  #allocation1 [shape = 'u32[72,128]{1,0:T(1,128)}', space=vmem, size = 0x9000, scoped, tag = 'internal scratch']
  %s0 = inlined_call_operand.vmem [shape: f32[1,512], index: 0, kind: input, shape index: {}]
  %s1 = inlined_call_operand.hbm [shape: f32[512,1024], index: 1, kind: input, shape index: {}]
  %s2 = inlined_call_operand.hbm [shape: f32[1,1024], index: 2, kind: input, shape index: {}]
  %s3 = inlined_call_operand.hbm [shape: f32[1024,128], index: 3, kind: input, shape index: {}]
  %s4 = inlined_call_operand.hbm [shape: f32[1,128], index: 4, kind: input, shape index: {}]
  %s5 = inlined_call_operand.vmem [shape: f32[1,128], index: 5, kind: output, shape index: {}]
  %s6 = sld [smem:[#allocation0]]
  $region46: #{text_classifier_forward.1} parent=0
    _
  %s8 = ssub.s32 1, %s6
  %s9 = scalar_select 0, %s8, %s6
  $region1: #{text_classifier_forward.1} parent=0
    #allocation2 [shape = 'u8[2097152]{0}', space=vmem, size = 0x200000, scoped, tag = 'input window, operand 1, single buffered']
    #allocation3 [shape = 's32[1]{0}', space=sflag, size = 0x4, scoped, tag = 'scoped memory for text_classifier_forward.1']
    #allocation4 [shape = 'u8[4096]{0}', space=vmem, size = 0x1000, scoped, tag = 'input window, operand 2, single buffered']
    #allocation5 [shape = 's32[1]{0}', space=sflag, size = 0x4, scoped, tag = 'scoped memory for text_classifier_forward.1']
    #allocation6 [shape = 'u8[524288]{0}', space=vmem, size = 0x80000, scoped, tag = 'input window, operand 3, single buffered']
    #allocation7 [shape = 'u8[512]{0}', space=vmem, size = 0x400, scoped, tag = 'input window, operand 4, single buffered']
    #allocation8 [shape = 's32[1]{0}', space=sflag, size = 0x4, scoped, tag = 'scoped memory for text_classifier_forward.1']
    %10 = vsyncpa [#allocation3], 0
    %11 = vsyncpa [#allocation5], 0
    %12 = vsyncpa [#allocation8], 0
    // Predicated region
    $region2: #{text_classifier_forward.1} parent=1 // pred_check
      _
    $region3: #{text_classifier_forward.1} parent=1 // pred_check_branch
      %14 = sbr.rel (0) target = $region5
    $region4: #{text_classifier_forward.1} parent=1 // pred_region
      _
    $region5: #{text_classifier_forward.1} parent=1 // pred_fallthru
      _
    // Predicated region
    $region6: #{text_classifier_forward.1} parent=1 // pred_check
      _
    $region7: #{text_classifier_forward.1} parent=1 // pred_check_branch
      %16 = sbr.rel (0) target = $region9
    $region8: #{text_classifier_forward.1} parent=1 // pred_region
      %18 = vsyncadd [#allocation3], 0
      %s19 = sshll.u32 %s1, 4
      %s20 = int_to_ptr.hbm [resolvable:$true] %s19
      %s21 = sshll.u32 [#allocation2], 4
      %s22 = int_to_ptr.vmem [resolvable:$true] %s21
      %27 = dma.hbm_to_vmem [thread:$0]  %s20, 65536, %s22, [#allocation3], 1024, 1024, 64
    $region9: #{text_classifier_forward.1} parent=1 // pred_fallthru
      _
    // Predicated region
    $region10: #{text_classifier_forward.1} parent=1 // pred_check
      _
    $region11: #{text_classifier_forward.1} parent=1 // pred_check_branch
      %29 = sbr.rel (0) target = $region13
    $region12: #{text_classifier_forward.1} parent=1 // pred_region
      %31 = vsyncadd [#allocation5], 0
      %s33 = sshll.u32 %s2, 4
      %s34 = int_to_ptr.hbm [resolvable:$true] %s33
      %s35 = sshll.u32 [#allocation4], 4
      %s36 = int_to_ptr.vmem [resolvable:$true] %s35
      %38 = dma.hbm_to_vmem [thread:$0]  %s34, 128, %s36, [#allocation5]
    $region13: #{text_classifier_forward.1} parent=1 // pred_fallthru
      _
    // Predicated region
    $region14: #{text_classifier_forward.1} parent=1 // pred_check
      _
    $region15: #{text_classifier_forward.1} parent=1 // pred_check_branch
      %40 = sbr.rel (0) target = $region17
    $region16: #{text_classifier_forward.1} parent=1 // pred_region
      %42 = vsyncadd [#allocation5], 0
      %s43 = sshll.u32 %s3, 4
      %s44 = int_to_ptr.hbm [resolvable:$true] %s43
      %s45 = sshll.u32 [#allocation6], 4
      %s46 = int_to_ptr.vmem [resolvable:$true] %s45
      %51 = dma.hbm_to_vmem [thread:$0]  %s44, 16384, %s46, [#allocation5], 128, 128, 8
    $region17: #{text_classifier_forward.1} parent=1 // pred_fallthru
      _
    // Predicated region
    $region18: #{text_classifier_forward.1} parent=1 // pred_check
      _
    $region19: #{text_classifier_forward.1} parent=1 // pred_check_branch
      %53 = sbr.rel (0) target = $region21
    $region20: #{text_classifier_forward.1} parent=1 // pred_region
      %55 = vsyncadd [#allocation8], 0
      %s57 = sshll.u32 %s4, 4
      %s58 = int_to_ptr.hbm [resolvable:$true] %s57
      %s59 = sshll.u32 [#allocation7], 4
      %s60 = int_to_ptr.vmem [resolvable:$true] %s59
      %62 = dma.hbm_to_vmem [thread:$0]  %s58, 16, %s60, [#allocation8]
    $region21: #{text_classifier_forward.1} parent=1 // pred_fallthru
      _
    // Predicated region
    $region22: #{text_classifier_forward.1} parent=1 // pred_check
      _
    $region23: #{text_classifier_forward.1} parent=1 // pred_check_branch
      %64 = sbr.rel (0) target = $region25
    $region24: #{text_classifier_forward.1} parent=1 // pred_region
      %66 = dma.done [#allocation3], 65536
    $region25: #{text_classifier_forward.1} parent=1 // pred_fallthru
      _
    // Predicated region
    $region26: #{text_classifier_forward.1} parent=1 // pred_check
      _
    $region27: #{text_classifier_forward.1} parent=1 // pred_check_branch
      %68 = sbr.rel (0) target = $region29
    $region28: #{text_classifier_forward.1} parent=1 // pred_region
      %70 = dma.done [#allocation5], 128
    $region29: #{text_classifier_forward.1} parent=1 // pred_fallthru
      _
    // Predicated region
    $region30: #{text_classifier_forward.1} parent=1 // pred_check
      _
    $region31: #{text_classifier_forward.1} parent=1 // pred_check_branch
      %72 = sbr.rel (0) target = $region33
    $region32: #{text_classifier_forward.1} parent=1 // pred_region
      %74 = dma.done [#allocation5], 16384
    $region33: #{text_classifier_forward.1} parent=1 // pred_fallthru
      _
    // Predicated region
    $region34: #{text_classifier_forward.1} parent=1 // pred_check
      _
    $region35: #{text_classifier_forward.1} parent=1 // pred_check_branch
      %76 = sbr.rel (0) target = $region37
    $region36: #{text_classifier_forward.1} parent=1 // pred_region
      %78 = dma.done [#allocation8], 16
    $region37: #{text_classifier_forward.1} parent=1 // pred_fallthru
      _
    %v79 = vld [vmem:[%s0] sm:$0xf]
    %v80 = vld [vmem:[#allocation2] sm:$0xff]
    %v81 = vld [vmem:[#allocation2 + $0x8] sm:$0xff]
    %v82 = vld [vmem:[#allocation2 + $0x10] sm:$0xff]
    %v83 = vld [vmem:[#allocation2 + $0x18] sm:$0xff]
    %v84 = vld [vmem:[#allocation2 + $0x20] sm:$0xff]
    %v85 = vld [vmem:[#allocation2 + $0x28] sm:$0xff]
    %v86 = vld [vmem:[#allocation2 + $0x30] sm:$0xff]
    %v87 = vld [vmem:[#allocation2 + $0x38] sm:$0xff]
    %v88 = vld [vmem:[#allocation2 + $0x40] sm:$0xff]
    %v89 = vld [vmem:[#allocation2 + $0x48] sm:$0xff]
    %v90 = vld [vmem:[#allocation2 + $0x50] sm:$0xff]
    %v91 = vld [vmem:[#allocation2 + $0x58] sm:$0xff]
    %v92 = vld [vmem:[#allocation2 + $0x60] sm:$0xff]
    %v93 = vld [vmem:[#allocation2 + $0x68] sm:$0xff]
    %v94 = vld [vmem:[#allocation2 + $0x70] sm:$0xff]
    %v95 = vld [vmem:[#allocation2 + $0x78] sm:$0xff]
    %v96 = vld [vmem:[#allocation2 + $0x80] sm:$0xff]
    %v97 = vld [vmem:[#allocation2 + $0x88] sm:$0xff]
    %v98 = vld [vmem:[#allocation2 + $0x90] sm:$0xff]
    %v99 = vld [vmem:[#allocation2 + $0x98] sm:$0xff]
    %v100 = vld [vmem:[#allocation2 + $0xa0] sm:$0xff]
    %v101 = vld [vmem:[#allocation2 + $0xa8] sm:$0xff]
    %v102 = vld [vmem:[#allocation2 + $0xb0] sm:$0xff]
    %v103 = vld [vmem:[#allocation2 + $0xb8] sm:$0xff]
    %v104 = vld [vmem:[#allocation2 + $0xc0] sm:$0xff]
    %v105 = vld [vmem:[#allocation2 + $0xc8] sm:$0xff]
    %v106 = vld [vmem:[#allocation2 + $0xd0] sm:$0xff]
    %v107 = vld [vmem:[#allocation2 + $0xd8] sm:$0xff]
    %v108 = vld [vmem:[#allocation2 + $0xe0] sm:$0xff]
    %v109 = vld [vmem:[#allocation2 + $0xe8] sm:$0xff]
    %v110 = vld [vmem:[#allocation2 + $0xf0] sm:$0xff]
    %v111 = vld [vmem:[#allocation2 + $0xf8] sm:$0xff]
    %v112 = vld [vmem:[#allocation2 + $0x100] sm:$0xff]
    %v113 = vld [vmem:[#allocation2 + $0x108] sm:$0xff]
    %v114 = vld [vmem:[#allocation2 + $0x110] sm:$0xff]
    %v115 = vld [vmem:[#allocation2 + $0x118] sm:$0xff]
    %v116 = vld [vmem:[#allocation2 + $0x120] sm:$0xff]
    %v117 = vld [vmem:[#allocation2 + $0x128] sm:$0xff]
    %v118 = vld [vmem:[#allocation2 + $0x130] sm:$0xff]
    %v119 = vld [vmem:[#allocation2 + $0x138] sm:$0xff]
    %v120 = vld [vmem:[#allocation2 + $0x140] sm:$0xff]
    %v121 = vld [vmem:[#allocation2 + $0x148] sm:$0xff]
    %v122 = vld [vmem:[#allocation2 + $0x150] sm:$0xff]
    %v123 = vld [vmem:[#allocation2 + $0x158] sm:$0xff]
    %v124 = vld [vmem:[#allocation2 + $0x160] sm:$0xff]
    %v125 = vld [vmem:[#allocation2 + $0x168] sm:$0xff]
    %v126 = vld [vmem:[#allocation2 + $0x170] sm:$0xff]
    %v127 = vld [vmem:[#allocation2 + $0x178] sm:$0xff]
    %v128 = vld [vmem:[#allocation2 + $0x180] sm:$0xff]
    %v129 = vld [vmem:[#allocation2 + $0x188] sm:$0xff]
    %v130 = vld [vmem:[#allocation2 + $0x190] sm:$0xff]
    %v131 = vld [vmem:[#allocation2 + $0x198] sm:$0xff]
    %v132 = vld [vmem:[#allocation2 + $0x1a0] sm:$0xff]
    %v133 = vld [vmem:[#allocation2 + $0x1a8] sm:$0xff]
    %v134 = vld [vmem:[#allocation2 + $0x1b0] sm:$0xff]
    %v135 = vld [vmem:[#allocation2 + $0x1b8] sm:$0xff]
    %v136 = vld [vmem:[#allocation2 + $0x1c0] sm:$0xff]
    %v137 = vld [vmem:[#allocation2 + $0x1c8] sm:$0xff]
    %v138 = vld [vmem:[#allocation2 + $0x1d0] sm:$0xff]
    %v139 = vld [vmem:[#allocation2 + $0x1d8] sm:$0xff]
    %v140 = vld [vmem:[#allocation2 + $0x1e0] sm:$0xff]
    %v141 = vld [vmem:[#allocation2 + $0x1e8] sm:$0xff]
    %v142 = vld [vmem:[#allocation2 + $0x1f0] sm:$0xff]
    %v143 = vld [vmem:[#allocation2 + $0x1f8] sm:$0xff]
    %v144 = vld [vmem:[#allocation2 + $0x200] sm:$0xff]
    %v145 = vld [vmem:[#allocation2 + $0x208] sm:$0xff]
    %v146 = vld [vmem:[#allocation2 + $0x210] sm:$0xff]
    %v147 = vld [vmem:[#allocation2 + $0x218] sm:$0xff]
    %v148 = vld [vmem:[#allocation2 + $0x220] sm:$0xff]
    %v149 = vld [vmem:[#allocation2 + $0x228] sm:$0xff]
    %v150 = vld [vmem:[#allocation2 + $0x230] sm:$0xff]
    %v151 = vld [vmem:[#allocation2 + $0x238] sm:$0xff]
    %v152 = vld [vmem:[#allocation2 + $0x240] sm:$0xff]
    %v153 = vld [vmem:[#allocation2 + $0x248] sm:$0xff]
    %v154 = vld [vmem:[#allocation2 + $0x250] sm:$0xff]
    %v155 = vld [vmem:[#allocation2 + $0x258] sm:$0xff]
    %v156 = vld [vmem:[#allocation2 + $0x260] sm:$0xff]
    %v157 = vld [vmem:[#allocation2 + $0x268] sm:$0xff]
    %v158 = vld [vmem:[#allocation2 + $0x270] sm:$0xff]
    %v159 = vld [vmem:[#allocation2 + $0x278] sm:$0xff]
    %v160 = vld [vmem:[#allocation2 + $0x280] sm:$0xff]
    %v161 = vld [vmem:[#allocation2 + $0x288] sm:$0xff]
    %v162 = vld [vmem:[#allocation2 + $0x290] sm:$0xff]
    %v163 = vld [vmem:[#allocation2 + $0x298] sm:$0xff]
    %v164 = vld [vmem:[#allocation2 + $0x2a0] sm:$0xff]
    %v165 = vld [vmem:[#allocation2 + $0x2a8] sm:$0xff]
    %v166 = vld [vmem:[#allocation2 + $0x2b0] sm:$0xff]
    %v167 = vld [vmem:[#allocation2 + $0x2b8] sm:$0xff]
    %v168 = vld [vmem:[#allocation2 + $0x2c0] sm:$0xff]
    %v169 = vld [vmem:[#allocation2 + $0x2c8] sm:$0xff]
    %v170 = vld [vmem:[#allocation2 + $0x2d0] sm:$0xff]
    %v171 = vld [vmem:[#allocation2 + $0x2d8] sm:$0xff]
    %v172 = vld [vmem:[#allocation2 + $0x2e0] sm:$0xff]
    %v173 = vld [vmem:[#allocation2 + $0x2e8] sm:$0xff]
    %v174 = vld [vmem:[#allocation2 + $0x2f0] sm:$0xff]
    %v175 = vld [vmem:[#allocation2 + $0x2f8] sm:$0xff]
    %v176 = vld [vmem:[#allocation2 + $0x300] sm:$0xff]
    %v177 = vld [vmem:[#allocation2 + $0x308] sm:$0xff]
    %v178 = vld [vmem:[#allocation2 + $0x310] sm:$0xff]
    %v179 = vld [vmem:[#allocation2 + $0x318] sm:$0xff]
    %v180 = vld [vmem:[#allocation2 + $0x320] sm:$0xff]
    %v181 = vld [vmem:[#allocation2 + $0x328] sm:$0xff]
    %v182 = vld [vmem:[#allocation2 + $0x330] sm:$0xff]
    %v183 = vld [vmem:[#allocation2 + $0x338] sm:$0xff]
    %v184 = vld [vmem:[#allocation2 + $0x340] sm:$0xff]
    %v185 = vld [vmem:[#allocation2 + $0x348] sm:$0xff]
    %v186 = vld [vmem:[#allocation2 + $0x350] sm:$0xff]
    %v187 = vld [vmem:[#allocation2 + $0x358] sm:$0xff]
    %v188 = vld [vmem:[#allocation2 + $0x360] sm:$0xff]
    %v189 = vld [vmem:[#allocation2 + $0x368] sm:$0xff]
    %v190 = vld [vmem:[#allocation2 + $0x370] sm:$0xff]
    %v191 = vld [vmem:[#allocation2 + $0x378] sm:$0xff]
    %v192 = vld [vmem:[#allocation2 + $0x380] sm:$0xff]
    %v193 = vld [vmem:[#allocation2 + $0x388] sm:$0xff]
    %v194 = vld [vmem:[#allocation2 + $0x390] sm:$0xff]
    %v195 = vld [vmem:[#allocation2 + $0x398] sm:$0xff]
    %v196 = vld [vmem:[#allocation2 + $0x3a0] sm:$0xff]
    %v197 = vld [vmem:[#allocation2 + $0x3a8] sm:$0xff]
    %v198 = vld [vmem:[#allocation2 + $0x3b0] sm:$0xff]
    %v199 = vld [vmem:[#allocation2 + $0x3b8] sm:$0xff]
    %v200 = vld [vmem:[#allocation2 + $0x3c0] sm:$0xff]
    %v201 = vld [vmem:[#allocation2 + $0x3c8] sm:$0xff]
    %v202 = vld [vmem:[#allocation2 + $0x3d0] sm:$0xff]
    %v203 = vld [vmem:[#allocation2 + $0x3d8] sm:$0xff]
    %v204 = vld [vmem:[#allocation2 + $0x3e0] sm:$0xff]
    %v205 = vld [vmem:[#allocation2 + $0x3e8] sm:$0xff]
    %v206 = vld [vmem:[#allocation2 + $0x3f0] sm:$0xff]
    %v207 = vld [vmem:[#allocation2 + $0x3f8] sm:$0xff]
    %v208 = vld [vmem:[#allocation2 + $0x400] sm:$0xff]
    %v209 = vld [vmem:[#allocation2 + $0x408] sm:$0xff]
    %v210 = vld [vmem:[#allocation2 + $0x410] sm:$0xff]
    %v211 = vld [vmem:[#allocation2 + $0x418] sm:$0xff]
    %v212 = vld [vmem:[#allocation2 + $0x420] sm:$0xff]
    %v213 = vld [vmem:[#allocation2 + $0x428] sm:$0xff]
    %v214 = vld [vmem:[#allocation2 + $0x430] sm:$0xff]
    %v215 = vld [vmem:[#allocation2 + $0x438] sm:$0xff]
    %v216 = vld [vmem:[#allocation2 + $0x440] sm:$0xff]
    %v217 = vld [vmem:[#allocation2 + $0x448] sm:$0xff]
    %v218 = vld [vmem:[#allocation2 + $0x450] sm:$0xff]
    %v219 = vld [vmem:[#allocation2 + $0x458] sm:$0xff]
    %v220 = vld [vmem:[#allocation2 + $0x460] sm:$0xff]
    %v221 = vld [vmem:[#allocation2 + $0x468] sm:$0xff]
    %v222 = vld [vmem:[#allocation2 + $0x470] sm:$0xff]
    %v223 = vld [vmem:[#allocation2 + $0x478] sm:$0xff]
    %v224 = vld [vmem:[#allocation2 + $0x480] sm:$0xff]
    %v225 = vld [vmem:[#allocation2 + $0x488] sm:$0xff]
    %v226 = vld [vmem:[#allocation2 + $0x490] sm:$0xff]
    %v227 = vld [vmem:[#allocation2 + $0x498] sm:$0xff]
    %v228 = vld [vmem:[#allocation2 + $0x4a0] sm:$0xff]
    %v229 = vld [vmem:[#allocation2 + $0x4a8] sm:$0xff]
    %v230 = vld [vmem:[#allocation2 + $0x4b0] sm:$0xff]
    %v231 = vld [vmem:[#allocation2 + $0x4b8] sm:$0xff]
    %v232 = vld [vmem:[#allocation2 + $0x4c0] sm:$0xff]
    %v233 = vld [vmem:[#allocation2 + $0x4c8] sm:$0xff]
    %v234 = vld [vmem:[#allocation2 + $0x4d0] sm:$0xff]
    %v235 = vld [vmem:[#allocation2 + $0x4d8] sm:$0xff]
    %v236 = vld [vmem:[#allocation2 + $0x4e0] sm:$0xff]
    %v237 = vld [vmem:[#allocation2 + $0x4e8] sm:$0xff]
    %v238 = vld [vmem:[#allocation2 + $0x4f0] sm:$0xff]
    %v239 = vld [vmem:[#allocation2 + $0x4f8] sm:$0xff]
    %v240 = vld [vmem:[#allocation2 + $0x500] sm:$0xff]
    %v241 = vld [vmem:[#allocation2 + $0x508] sm:$0xff]
    %v242 = vld [vmem:[#allocation2 + $0x510] sm:$0xff]
    %v243 = vld [vmem:[#allocation2 + $0x518] sm:$0xff]
    %v244 = vld [vmem:[#allocation2 + $0x520] sm:$0xff]
    %v245 = vld [vmem:[#allocation2 + $0x528] sm:$0xff]
    %v246 = vld [vmem:[#allocation2 + $0x530] sm:$0xff]
    %v247 = vld [vmem:[#allocation2 + $0x538] sm:$0xff]
    %v248 = vld [vmem:[#allocation2 + $0x540] sm:$0xff]
    %v249 = vld [vmem:[#allocation2 + $0x548] sm:$0xff]
    %v250 = vld [vmem:[#allocation2 + $0x550] sm:$0xff]
    %v251 = vld [vmem:[#allocation2 + $0x558] sm:$0xff]
    %v252 = vld [vmem:[#allocation2 + $0x560] sm:$0xff]
    %v253 = vld [vmem:[#allocation2 + $0x568] sm:$0xff]
    %v254 = vld [vmem:[#allocation2 + $0x570] sm:$0xff]
    %v255 = vld [vmem:[#allocation2 + $0x578] sm:$0xff]
    %v256 = vld [vmem:[#allocation2 + $0x580] sm:$0xff]
    %v257 = vld [vmem:[#allocation2 + $0x588] sm:$0xff]
    %v258 = vld [vmem:[#allocation2 + $0x590] sm:$0xff]
    %v259 = vld [vmem:[#allocation2 + $0x598] sm:$0xff]
    %v260 = vld [vmem:[#allocation2 + $0x5a0] sm:$0xff]
    %v261 = vld [vmem:[#allocation2 + $0x5a8] sm:$0xff]
    %v262 = vld [vmem:[#allocation2 + $0x5b0] sm:$0xff]
    %v263 = vld [vmem:[#allocation2 + $0x5b8] sm:$0xff]
    %v264 = vld [vmem:[#allocation2 + $0x5c0] sm:$0xff]
    %v265 = vld [vmem:[#allocation2 + $0x5c8] sm:$0xff]
    %v266 = vld [vmem:[#allocation2 + $0x5d0] sm:$0xff]
    %v267 = vld [vmem:[#allocation2 + $0x5d8] sm:$0xff]
    %v268 = vld [vmem:[#allocation2 + $0x5e0] sm:$0xff]
    %v269 = vld [vmem:[#allocation2 + $0x5e8] sm:$0xff]
    %v270 = vld [vmem:[#allocation2 + $0x5f0] sm:$0xff]
    %v271 = vld [vmem:[#allocation2 + $0x5f8] sm:$0xff]
    %v272 = vld [vmem:[#allocation2 + $0x600] sm:$0xff]
    %v273 = vld [vmem:[#allocation2 + $0x608] sm:$0xff]
    %v274 = vld [vmem:[#allocation2 + $0x610] sm:$0xff]
    %v275 = vld [vmem:[#allocation2 + $0x618] sm:$0xff]
    %v276 = vld [vmem:[#allocation2 + $0x620] sm:$0xff]
    %v277 = vld [vmem:[#allocation2 + $0x628] sm:$0xff]
    %v278 = vld [vmem:[#allocation2 + $0x630] sm:$0xff]
    %v279 = vld [vmem:[#allocation2 + $0x638] sm:$0xff]
    %v280 = vld [vmem:[#allocation2 + $0x640] sm:$0xff]
    %v281 = vld [vmem:[#allocation2 + $0x648] sm:$0xff]
    %v282 = vld [vmem:[#allocation2 + $0x650] sm:$0xff]
    %v283 = vld [vmem:[#allocation2 + $0x658] sm:$0xff]
    %v284 = vld [vmem:[#allocation2 + $0x660] sm:$0xff]
    %v285 = vld [vmem:[#allocation2 + $0x668] sm:$0xff]
    %v286 = vld [vmem:[#allocation2 + $0x670] sm:$0xff]
    %v287 = vld [vmem:[#allocation2 + $0x678] sm:$0xff]
    %v288 = vld [vmem:[#allocation2 + $0x680] sm:$0xff]
    %v289 = vld [vmem:[#allocation2 + $0x688] sm:$0xff]
    %v290 = vld [vmem:[#allocation2 + $0x690] sm:$0xff]
    %v291 = vld [vmem:[#allocation2 + $0x698] sm:$0xff]
    %v292 = vld [vmem:[#allocation2 + $0x6a0] sm:$0xff]
    %v293 = vld [vmem:[#allocation2 + $0x6a8] sm:$0xff]
    %v294 = vld [vmem:[#allocation2 + $0x6b0] sm:$0xff]
    %v295 = vld [vmem:[#allocation2 + $0x6b8] sm:$0xff]
    %v296 = vld [vmem:[#allocation2 + $0x6c0] sm:$0xff]
    %v297 = vld [vmem:[#allocation2 + $0x6c8] sm:$0xff]
    %v298 = vld [vmem:[#allocation2 + $0x6d0] sm:$0xff]
    %v299 = vld [vmem:[#allocation2 + $0x6d8] sm:$0xff]
    %v300 = vld [vmem:[#allocation2 + $0x6e0] sm:$0xff]
    %v301 = vld [vmem:[#allocation2 + $0x6e8] sm:$0xff]
    %v302 = vld [vmem:[#allocation2 + $0x6f0] sm:$0xff]
    %v303 = vld [vmem:[#allocation2 + $0x6f8] sm:$0xff]
    %v304 = vld [vmem:[#allocation2 + $0x700] sm:$0xff]
    %v305 = vld [vmem:[#allocation2 + $0x708] sm:$0xff]
    %v306 = vld [vmem:[#allocation2 + $0x710] sm:$0xff]
    %v307 = vld [vmem:[#allocation2 + $0x718] sm:$0xff]
    %v308 = vld [vmem:[#allocation2 + $0x720] sm:$0xff]
    %v309 = vld [vmem:[#allocation2 + $0x728] sm:$0xff]
    %v310 = vld [vmem:[#allocation2 + $0x730] sm:$0xff]
    %v311 = vld [vmem:[#allocation2 + $0x738] sm:$0xff]
    %v312 = vld [vmem:[#allocation2 + $0x740] sm:$0xff]
    %v313 = vld [vmem:[#allocation2 + $0x748] sm:$0xff]
    %v314 = vld [vmem:[#allocation2 + $0x750] sm:$0xff]
    %v315 = vld [vmem:[#allocation2 + $0x758] sm:$0xff]
    %v316 = vld [vmem:[#allocation2 + $0x760] sm:$0xff]
    %v317 = vld [vmem:[#allocation2 + $0x768] sm:$0xff]
    %v318 = vld [vmem:[#allocation2 + $0x770] sm:$0xff]
    %v319 = vld [vmem:[#allocation2 + $0x778] sm:$0xff]
    %v320 = vld [vmem:[#allocation2 + $0x780] sm:$0xff]
    %v321 = vld [vmem:[#allocation2 + $0x788] sm:$0xff]
    %v322 = vld [vmem:[#allocation2 + $0x790] sm:$0xff]
    %v323 = vld [vmem:[#allocation2 + $0x798] sm:$0xff]
    %v324 = vld [vmem:[#allocation2 + $0x7a0] sm:$0xff]
    %v325 = vld [vmem:[#allocation2 + $0x7a8] sm:$0xff]
    %v326 = vld [vmem:[#allocation2 + $0x7b0] sm:$0xff]
    %v327 = vld [vmem:[#allocation2 + $0x7b8] sm:$0xff]
    %v328 = vld [vmem:[#allocation2 + $0x7c0] sm:$0xff]
    %v329 = vld [vmem:[#allocation2 + $0x7c8] sm:$0xff]
    %v330 = vld [vmem:[#allocation2 + $0x7d0] sm:$0xff]
    %v331 = vld [vmem:[#allocation2 + $0x7d8] sm:$0xff]
    %v332 = vld [vmem:[#allocation2 + $0x7e0] sm:$0xff]
    %v333 = vld [vmem:[#allocation2 + $0x7e8] sm:$0xff]
    %v334 = vld [vmem:[#allocation2 + $0x7f0] sm:$0xff]
    %v335 = vld [vmem:[#allocation2 + $0x7f8] sm:$0xff]
    %v336 = vld [vmem:[#allocation2 + $0x800] sm:$0xff]
    %v337 = vld [vmem:[#allocation2 + $0x808] sm:$0xff]
    %v338 = vld [vmem:[#allocation2 + $0x810] sm:$0xff]
    %v339 = vld [vmem:[#allocation2 + $0x818] sm:$0xff]
    %v340 = vld [vmem:[#allocation2 + $0x820] sm:$0xff]
    %v341 = vld [vmem:[#allocation2 + $0x828] sm:$0xff]
    %v342 = vld [vmem:[#allocation2 + $0x830] sm:$0xff]
    %v343 = vld [vmem:[#allocation2 + $0x838] sm:$0xff]
    %v344 = vld [vmem:[#allocation2 + $0x840] sm:$0xff]
    %v345 = vld [vmem:[#allocation2 + $0x848] sm:$0xff]
    %v346 = vld [vmem:[#allocation2 + $0x850] sm:$0xff]
    %v347 = vld [vmem:[#allocation2 + $0x858] sm:$0xff]
    %v348 = vld [vmem:[#allocation2 + $0x860] sm:$0xff]
    %v349 = vld [vmem:[#allocation2 + $0x868] sm:$0xff]
    %v350 = vld [vmem:[#allocation2 + $0x870] sm:$0xff]
    %v351 = vld [vmem:[#allocation2 + $0x878] sm:$0xff]
    %v352 = vld [vmem:[#allocation2 + $0x880] sm:$0xff]
    %v353 = vld [vmem:[#allocation2 + $0x888] sm:$0xff]
    %v354 = vld [vmem:[#allocation2 + $0x890] sm:$0xff]
    %v355 = vld [vmem:[#allocation2 + $0x898] sm:$0xff]
    %v356 = vld [vmem:[#allocation2 + $0x8a0] sm:$0xff]
    %v357 = vld [vmem:[#allocation2 + $0x8a8] sm:$0xff]
    %v358 = vld [vmem:[#allocation2 + $0x8b0] sm:$0xff]
    %v359 = vld [vmem:[#allocation2 + $0x8b8] sm:$0xff]
    %v360 = vld [vmem:[#allocation2 + $0x8c0] sm:$0xff]
    %v361 = vld [vmem:[#allocation2 + $0x8c8] sm:$0xff]
    %v362 = vld [vmem:[#allocation2 + $0x8d0] sm:$0xff]
    %v363 = vld [vmem:[#allocation2 + $0x8d8] sm:$0xff]
    %v364 = vld [vmem:[#allocation2 + $0x8e0] sm:$0xff]
    %v365 = vld [vmem:[#allocation2 + $0x8e8] sm:$0xff]
    %v366 = vld [vmem:[#allocation2 + $0x8f0] sm:$0xff]
    %v367 = vld [vmem:[#allocation2 + $0x8f8] sm:$0xff]
    %v368 = vld [vmem:[#allocation2 + $0x900] sm:$0xff]
    %v369 = vld [vmem:[#allocation2 + $0x908] sm:$0xff]
    %v370 = vld [vmem:[#allocation2 + $0x910] sm:$0xff]
    %v371 = vld [vmem:[#allocation2 + $0x918] sm:$0xff]
    %v372 = vld [vmem:[#allocation2 + $0x920] sm:$0xff]
    %v373 = vld [vmem:[#allocation2 + $0x928] sm:$0xff]
    %v374 = vld [vmem:[#allocation2 + $0x930] sm:$0xff]
    %v375 = vld [vmem:[#allocation2 + $0x938] sm:$0xff]
    %v376 = vld [vmem:[#allocation2 + $0x940] sm:$0xff]
    %v377 = vld [vmem:[#allocation2 + $0x948] sm:$0xff]
    %v378 = vld [vmem:[#allocation2 + $0x950] sm:$0xff]
    %v379 = vld [vmem:[#allocation2 + $0x958] sm:$0xff]
    %v380 = vld [vmem:[#allocation2 + $0x960] sm:$0xff]
    %v381 = vld [vmem:[#allocation2 + $0x968] sm:$0xff]
    %v382 = vld [vmem:[#allocation2 + $0x970] sm:$0xff]
    %v383 = vld [vmem:[#allocation2 + $0x978] sm:$0xff]
    %v384 = vld [vmem:[#allocation2 + $0x980] sm:$0xff]
    %v385 = vld [vmem:[#allocation2 + $0x988] sm:$0xff]
    %v386 = vld [vmem:[#allocation2 + $0x990] sm:$0xff]
    %v387 = vld [vmem:[#allocation2 + $0x998] sm:$0xff]
    %v388 = vld [vmem:[#allocation2 + $0x9a0] sm:$0xff]
    %v389 = vld [vmem:[#allocation2 + $0x9a8] sm:$0xff]
    %v390 = vld [vmem:[#allocation2 + $0x9b0] sm:$0xff]
    %v391 = vld [vmem:[#allocation2 + $0x9b8] sm:$0xff]
    %v392 = vld [vmem:[#allocation2 + $0x9c0] sm:$0xff]
    %v393 = vld [vmem:[#allocation2 + $0x9c8] sm:$0xff]
    %v394 = vld [vmem:[#allocation2 + $0x9d0] sm:$0xff]
    %v395 = vld [vmem:[#allocation2 + $0x9d8] sm:$0xff]
    %v396 = vld [vmem:[#allocation2 + $0x9e0] sm:$0xff]
    %v397 = vld [vmem:[#allocation2 + $0x9e8] sm:$0xff]
    %v398 = vld [vmem:[#allocation2 + $0x9f0] sm:$0xff]
    %v399 = vld [vmem:[#allocation2 + $0x9f8] sm:$0xff]
    %v400 = vld [vmem:[#allocation2 + $0xa00] sm:$0xff]
    %v401 = vld [vmem:[#allocation2 + $0xa08] sm:$0xff]
    %v402 = vld [vmem:[#allocation2 + $0xa10] sm:$0xff]
    %v403 = vld [vmem:[#allocation2 + $0xa18] sm:$0xff]
    %v404 = vld [vmem:[#allocation2 + $0xa20] sm:$0xff]
    %v405 = vld [vmem:[#allocation2 + $0xa28] sm:$0xff]
    %v406 = vld [vmem:[#allocation2 + $0xa30] sm:$0xff]
    %v407 = vld [vmem:[#allocation2 + $0xa38] sm:$0xff]
    %v408 = vld [vmem:[#allocation2 + $0xa40] sm:$0xff]
    %v409 = vld [vmem:[#allocation2 + $0xa48] sm:$0xff]
    %v410 = vld [vmem:[#allocation2 + $0xa50] sm:$0xff]
    %v411 = vld [vmem:[#allocation2 + $0xa58] sm:$0xff]
    %v412 = vld [vmem:[#allocation2 + $0xa60] sm:$0xff]
    %v413 = vld [vmem:[#allocation2 + $0xa68] sm:$0xff]
    %v414 = vld [vmem:[#allocation2 + $0xa70] sm:$0xff]
    %v415 = vld [vmem:[#allocation2 + $0xa78] sm:$0xff]
    %v416 = vld [vmem:[#allocation2 + $0xa80] sm:$0xff]
    %v417 = vld [vmem:[#allocation2 + $0xa88] sm:$0xff]
    %v418 = vld [vmem:[#allocation2 + $0xa90] sm:$0xff]
    %v419 = vld [vmem:[#allocation2 + $0xa98] sm:$0xff]
    %v420 = vld [vmem:[#allocation2 + $0xaa0] sm:$0xff]
    %v421 = vld [vmem:[#allocation2 + $0xaa8] sm:$0xff]
    %v422 = vld [vmem:[#allocation2 + $0xab0] sm:$0xff]
    %v423 = vld [vmem:[#allocation2 + $0xab8] sm:$0xff]
    %v424 = vld [vmem:[#allocation2 + $0xac0] sm:$0xff]
    %v425 = vld [vmem:[#allocation2 + $0xac8] sm:$0xff]
    %v426 = vld [vmem:[#allocation2 + $0xad0] sm:$0xff]
    %v427 = vld [vmem:[#allocation2 + $0xad8] sm:$0xff]
    %v428 = vld [vmem:[#allocation2 + $0xae0] sm:$0xff]
    %v429 = vld [vmem:[#allocation2 + $0xae8] sm:$0xff]
    %v430 = vld [vmem:[#allocation2 + $0xaf0] sm:$0xff]
    %v431 = vld [vmem:[#allocation2 + $0xaf8] sm:$0xff]
    %v432 = vld [vmem:[#allocation2 + $0xb00] sm:$0xff]
    %v433 = vld [vmem:[#allocation2 + $0xb08] sm:$0xff]
    %v434 = vld [vmem:[#allocation2 + $0xb10] sm:$0xff]
    %v435 = vld [vmem:[#allocation2 + $0xb18] sm:$0xff]
    %v436 = vld [vmem:[#allocation2 + $0xb20] sm:$0xff]
    %v437 = vld [vmem:[#allocation2 + $0xb28] sm:$0xff]
    %v438 = vld [vmem:[#allocation2 + $0xb30] sm:$0xff]
    %v439 = vld [vmem:[#allocation2 + $0xb38] sm:$0xff]
    %v440 = vld [vmem:[#allocation2 + $0xb40] sm:$0xff]
    %v441 = vld [vmem:[#allocation2 + $0xb48] sm:$0xff]
    %v442 = vld [vmem:[#allocation2 + $0xb50] sm:$0xff]
    %v443 = vld [vmem:[#allocation2 + $0xb58] sm:$0xff]
    %v444 = vld [vmem:[#allocation2 + $0xb60] sm:$0xff]
    %v445 = vld [vmem:[#allocation2 + $0xb68] sm:$0xff]
    %v446 = vld [vmem:[#allocation2 + $0xb70] sm:$0xff]
    %v447 = vld [vmem:[#allocation2 + $0xb78] sm:$0xff]
    %v448 = vld [vmem:[#allocation2 + $0xb80] sm:$0xff]
    %v449 = vld [vmem:[#allocation2 + $0xb88] sm:$0xff]
    %v450 = vld [vmem:[#allocation2 + $0xb90] sm:$0xff]
    %v451 = vld [vmem:[#allocation2 + $0xb98] sm:$0xff]
    %v452 = vld [vmem:[#allocation2 + $0xba0] sm:$0xff]
    %v453 = vld [vmem:[#allocation2 + $0xba8] sm:$0xff]
    %v454 = vld [vmem:[#allocation2 + $0xbb0] sm:$0xff]
    %v455 = vld [vmem:[#allocation2 + $0xbb8] sm:$0xff]
    %v456 = vld [vmem:[#allocation2 + $0xbc0] sm:$0xff]
    %v457 = vld [vmem:[#allocation2 + $0xbc8] sm:$0xff]
    %v458 = vld [vmem:[#allocation2 + $0xbd0] sm:$0xff]
    %v459 = vld [vmem:[#allocation2 + $0xbd8] sm:$0xff]
    %v460 = vld [vmem:[#allocation2 + $0xbe0] sm:$0xff]
    %v461 = vld [vmem:[#allocation2 + $0xbe8] sm:$0xff]
    %v462 = vld [vmem:[#allocation2 + $0xbf0] sm:$0xff]
    %v463 = vld [vmem:[#allocation2 + $0xbf8] sm:$0xff]
    %v464 = vld [vmem:[#allocation2 + $0xc00] sm:$0xff]
    %v465 = vld [vmem:[#allocation2 + $0xc08] sm:$0xff]
    %v466 = vld [vmem:[#allocation2 + $0xc10] sm:$0xff]
    %v467 = vld [vmem:[#allocation2 + $0xc18] sm:$0xff]
    %v468 = vld [vmem:[#allocation2 + $0xc20] sm:$0xff]
    %v469 = vld [vmem:[#allocation2 + $0xc28] sm:$0xff]
    %v470 = vld [vmem:[#allocation2 + $0xc30] sm:$0xff]
    %v471 = vld [vmem:[#allocation2 + $0xc38] sm:$0xff]
    %v472 = vld [vmem:[#allocation2 + $0xc40] sm:$0xff]
    %v473 = vld [vmem:[#allocation2 + $0xc48] sm:$0xff]
    %v474 = vld [vmem:[#allocation2 + $0xc50] sm:$0xff]
    %v475 = vld [vmem:[#allocation2 + $0xc58] sm:$0xff]
    %v476 = vld [vmem:[#allocation2 + $0xc60] sm:$0xff]
    %v477 = vld [vmem:[#allocation2 + $0xc68] sm:$0xff]
    %v478 = vld [vmem:[#allocation2 + $0xc70] sm:$0xff]
    %v479 = vld [vmem:[#allocation2 + $0xc78] sm:$0xff]
    %v480 = vld [vmem:[#allocation2 + $0xc80] sm:$0xff]
    %v481 = vld [vmem:[#allocation2 + $0xc88] sm:$0xff]
    %v482 = vld [vmem:[#allocation2 + $0xc90] sm:$0xff]
    %v483 = vld [vmem:[#allocation2 + $0xc98] sm:$0xff]
    %v484 = vld [vmem:[#allocation2 + $0xca0] sm:$0xff]
    %v485 = vld [vmem:[#allocation2 + $0xca8] sm:$0xff]
    %v486 = vld [vmem:[#allocation2 + $0xcb0] sm:$0xff]
    %v487 = vld [vmem:[#allocation2 + $0xcb8] sm:$0xff]
    %v488 = vld [vmem:[#allocation2 + $0xcc0] sm:$0xff]
    %v489 = vld [vmem:[#allocation2 + $0xcc8] sm:$0xff]
    %v490 = vld [vmem:[#allocation2 + $0xcd0] sm:$0xff]
    %v491 = vld [vmem:[#allocation2 + $0xcd8] sm:$0xff]
    %v492 = vld [vmem:[#allocation2 + $0xce0] sm:$0xff]
    %v493 = vld [vmem:[#allocation2 + $0xce8] sm:$0xff]
    %v494 = vld [vmem:[#allocation2 + $0xcf0] sm:$0xff]
    %v495 = vld [vmem:[#allocation2 + $0xcf8] sm:$0xff]
    %v496 = vld [vmem:[#allocation2 + $0xd00] sm:$0xff]
    %v497 = vld [vmem:[#allocation2 + $0xd08] sm:$0xff]
    %v498 = vld [vmem:[#allocation2 + $0xd10] sm:$0xff]
    %v499 = vld [vmem:[#allocation2 + $0xd18] sm:$0xff]
    %v500 = vld [vmem:[#allocation2 + $0xd20] sm:$0xff]
    %v501 = vld [vmem:[#allocation2 + $0xd28] sm:$0xff]
    %v502 = vld [vmem:[#allocation2 + $0xd30] sm:$0xff]
    %v503 = vld [vmem:[#allocation2 + $0xd38] sm:$0xff]
    %v504 = vld [vmem:[#allocation2 + $0xd40] sm:$0xff]
    %v505 = vld [vmem:[#allocation2 + $0xd48] sm:$0xff]
    %v506 = vld [vmem:[#allocation2 + $0xd50] sm:$0xff]
    %v507 = vld [vmem:[#allocation2 + $0xd58] sm:$0xff]
    %v508 = vld [vmem:[#allocation2 + $0xd60] sm:$0xff]
    %v509 = vld [vmem:[#allocation2 + $0xd68] sm:$0xff]
    %v510 = vld [vmem:[#allocation2 + $0xd70] sm:$0xff]
    %v511 = vld [vmem:[#allocation2 + $0xd78] sm:$0xff]
    %v512 = vld [vmem:[#allocation2 + $0xd80] sm:$0xff]
    %v513 = vld [vmem:[#allocation2 + $0xd88] sm:$0xff]
    %v514 = vld [vmem:[#allocation2 + $0xd90] sm:$0xff]
    %v515 = vld [vmem:[#allocation2 + $0xd98] sm:$0xff]
    %v516 = vld [vmem:[#allocation2 + $0xda0] sm:$0xff]
    %v517 = vld [vmem:[#allocation2 + $0xda8] sm:$0xff]
    %v518 = vld [vmem:[#allocation2 + $0xdb0] sm:$0xff]
    %v519 = vld [vmem:[#allocation2 + $0xdb8] sm:$0xff]
    %v520 = vld [vmem:[#allocation2 + $0xdc0] sm:$0xff]
    %v521 = vld [vmem:[#allocation2 + $0xdc8] sm:$0xff]
    %v522 = vld [vmem:[#allocation2 + $0xdd0] sm:$0xff]
    %v523 = vld [vmem:[#allocation2 + $0xdd8] sm:$0xff]
    %v524 = vld [vmem:[#allocation2 + $0xde0] sm:$0xff]
    %v525 = vld [vmem:[#allocation2 + $0xde8] sm:$0xff]
    %v526 = vld [vmem:[#allocation2 + $0xdf0] sm:$0xff]
    %v527 = vld [vmem:[#allocation2 + $0xdf8] sm:$0xff]
    %v528 = vld [vmem:[#allocation2 + $0xe00] sm:$0xff]
    %v529 = vld [vmem:[#allocation2 + $0xe08] sm:$0xff]
    %v530 = vld [vmem:[#allocation2 + $0xe10] sm:$0xff]
    %v531 = vld [vmem:[#allocation2 + $0xe18] sm:$0xff]
    %v532 = vld [vmem:[#allocation2 + $0xe20] sm:$0xff]
    %v533 = vld [vmem:[#allocation2 + $0xe28] sm:$0xff]
    %v534 = vld [vmem:[#allocation2 + $0xe30] sm:$0xff]
    %v535 = vld [vmem:[#allocation2 + $0xe38] sm:$0xff]
    %v536 = vld [vmem:[#allocation2 + $0xe40] sm:$0xff]
    %v537 = vld [vmem:[#allocation2 + $0xe48] sm:$0xff]
    %v538 = vld [vmem:[#allocation2 + $0xe50] sm:$0xff]
    %v539 = vld [vmem:[#allocation2 + $0xe58] sm:$0xff]
    %v540 = vld [vmem:[#allocation2 + $0xe60] sm:$0xff]
    %v541 = vld [vmem:[#allocation2 + $0xe68] sm:$0xff]
    %v542 = vld [vmem:[#allocation2 + $0xe70] sm:$0xff]
    %v543 = vld [vmem:[#allocation2 + $0xe78] sm:$0xff]
    %v544 = vld [vmem:[#allocation2 + $0xe80] sm:$0xff]
    %v545 = vld [vmem:[#allocation2 + $0xe88] sm:$0xff]
    %v546 = vld [vmem:[#allocation2 + $0xe90] sm:$0xff]
    %v547 = vld [vmem:[#allocation2 + $0xe98] sm:$0xff]
    %v548 = vld [vmem:[#allocation2 + $0xea0] sm:$0xff]
    %v549 = vld [vmem:[#allocation2 + $0xea8] sm:$0xff]
    %v550 = vld [vmem:[#allocation2 + $0xeb0] sm:$0xff]
    %v551 = vld [vmem:[#allocation2 + $0xeb8] sm:$0xff]
    %v552 = vld [vmem:[#allocation2 + $0xec0] sm:$0xff]
    %v553 = vld [vmem:[#allocation2 + $0xec8] sm:$0xff]
    %v554 = vld [vmem:[#allocation2 + $0xed0] sm:$0xff]
    %v555 = vld [vmem:[#allocation2 + $0xed8] sm:$0xff]
    %v556 = vld [vmem:[#allocation2 + $0xee0] sm:$0xff]
    %v557 = vld [vmem:[#allocation2 + $0xee8] sm:$0xff]
    %v558 = vld [vmem:[#allocation2 + $0xef0] sm:$0xff]
    %v559 = vld [vmem:[#allocation2 + $0xef8] sm:$0xff]
    %v560 = vld [vmem:[#allocation2 + $0xf00] sm:$0xff]
    %v561 = vld [vmem:[#allocation2 + $0xf08] sm:$0xff]
    %v562 = vld [vmem:[#allocation2 + $0xf10] sm:$0xff]
    %v563 = vld [vmem:[#allocation2 + $0xf18] sm:$0xff]
    %v564 = vld [vmem:[#allocation2 + $0xf20] sm:$0xff]
    %v565 = vld [vmem:[#allocation2 + $0xf28] sm:$0xff]
    %v566 = vld [vmem:[#allocation2 + $0xf30] sm:$0xff]
    %v567 = vld [vmem:[#allocation2 + $0xf38] sm:$0xff]
    %v568 = vld [vmem:[#allocation2 + $0xf40] sm:$0xff]
    %v569 = vld [vmem:[#allocation2 + $0xf48] sm:$0xff]
    %v570 = vld [vmem:[#allocation2 + $0xf50] sm:$0xff]
    %v571 = vld [vmem:[#allocation2 + $0xf58] sm:$0xff]
    %v572 = vld [vmem:[#allocation2 + $0xf60] sm:$0xff]
    %v573 = vld [vmem:[#allocation2 + $0xf68] sm:$0xff]
    %v574 = vld [vmem:[#allocation2 + $0xf70] sm:$0xff]
    %v575 = vld [vmem:[#allocation2 + $0xf78] sm:$0xff]
    %v576 = vld [vmem:[#allocation2 + $0xf80] sm:$0xff]
    %v577 = vld [vmem:[#allocation2 + $0xf88] sm:$0xff]
    %v578 = vld [vmem:[#allocation2 + $0xf90] sm:$0xff]
    %v579 = vld [vmem:[#allocation2 + $0xf98] sm:$0xff]
    %v580 = vld [vmem:[#allocation2 + $0xfa0] sm:$0xff]
    %v581 = vld [vmem:[#allocation2 + $0xfa8] sm:$0xff]
    %v582 = vld [vmem:[#allocation2 + $0xfb0] sm:$0xff]
    %v583 = vld [vmem:[#allocation2 + $0xfb8] sm:$0xff]
    %v584 = vld [vmem:[#allocation2 + $0xfc0] sm:$0xff]
    %v585 = vld [vmem:[#allocation2 + $0xfc8] sm:$0xff]
    %v586 = vld [vmem:[#allocation2 + $0xfd0] sm:$0xff]
    %v587 = vld [vmem:[#allocation2 + $0xfd8] sm:$0xff]
    %v588 = vld [vmem:[#allocation2 + $0xfe0] sm:$0xff]
    %v589 = vld [vmem:[#allocation2 + $0xfe8] sm:$0xff]
    %v590 = vld [vmem:[#allocation2 + $0xff0] sm:$0xff]
    %v591 = vld [vmem:[#allocation2 + $0xff8] sm:$0xff]
    %v592 = vld [vmem:[#allocation4] sm:$0xff]
    %v594 = vperm.slane %v79, 0
    %v595 = vperm.slane %v79, 1
    %v596 = vperm.slane %v79, 2
    %v597 = vperm.slane %v79, 3
    %v603 = vperm.slane %v592, 0
    %v604 = vperm.slane %v592, 1
    %v605 = vperm.slane %v592, 2
    %v606 = vperm.slane %v592, 3
    %v607 = vperm.slane %v592, 4
    %v608 = vperm.slane %v592, 5
    %v609 = vperm.slane %v592, 6
    %v610 = vperm.slane %v592, 7
    %619 = vmatpush.msra.mxu0 %v200
    %620 = vmatpush.msra.mxu0 %v192
    %621 = vmatpush.msra.mxu0 %v184
    %622 = vmatpush.msra.mxu0 %v176
    %623 = vmatpush.msra.mxu0 %v168
    %624 = vmatpush.msra.mxu0 %v160
    %625 = vmatpush.msra.mxu0 %v152
    %626 = vmatpush.msra.mxu0 %v144
    %627 = vmatpush.msra.mxu0 %v136
    %628 = vmatpush.msra.mxu0 %v128
    %629 = vmatpush.msra.mxu0 %v120
    %630 = vmatpush.msra.mxu0 %v112
    %631 = vmatpush.msra.mxu0 %v104
    %632 = vmatpush.msra.mxu0 %v96
    %633 = vmatpush.msra.mxu0 %v88
    %634 = vmatpush.msra.mxu0 %v80
    %635 = vmatmul.f32.gmra.mxu0 %v594
    %v636 = vpop.f32.mrf.mxu0
    %v637 = vadd.f32 %v603, %v636
    %638 = vdwg.mxu0
    %639 = vmatpush.msra.mxu0 %v328
    %640 = vmatpush.msra.mxu0 %v320
    %641 = vmatpush.msra.mxu0 %v312
    %642 = vmatpush.msra.mxu0 %v304
    %643 = vmatpush.msra.mxu0 %v296
    %644 = vmatpush.msra.mxu0 %v288
    %645 = vmatpush.msra.mxu0 %v280
    %646 = vmatpush.msra.mxu0 %v272
    %647 = vmatpush.msra.mxu0 %v264
    %648 = vmatpush.msra.mxu0 %v256
    %649 = vmatpush.msra.mxu0 %v248
    %650 = vmatpush.msra.mxu0 %v240
    %651 = vmatpush.msra.mxu0 %v232
    %652 = vmatpush.msra.mxu0 %v224
    %653 = vmatpush.msra.mxu0 %v216
    %654 = vmatpush.msra.mxu0 %v208
    %655 = vmatmul.f32.gmra.mxu0 %v595
    %v656 = vpop.f32.mrf.mxu0
    %v657 = vadd.f32 %v637, %v656
    %658 = vdwg.mxu0
    %659 = vmatpush.msra.mxu0 %v456
    %660 = vmatpush.msra.mxu0 %v448
    %661 = vmatpush.msra.mxu0 %v440
    %662 = vmatpush.msra.mxu0 %v432
    %663 = vmatpush.msra.mxu0 %v424
    %664 = vmatpush.msra.mxu0 %v416
    %665 = vmatpush.msra.mxu0 %v408
    %666 = vmatpush.msra.mxu0 %v400
    %667 = vmatpush.msra.mxu0 %v392
    %668 = vmatpush.msra.mxu0 %v384
    %669 = vmatpush.msra.mxu0 %v376
    %670 = vmatpush.msra.mxu0 %v368
    %671 = vmatpush.msra.mxu0 %v360
    %672 = vmatpush.msra.mxu0 %v352
    %673 = vmatpush.msra.mxu0 %v344
    %674 = vmatpush.msra.mxu0 %v336
    %675 = vmatmul.f32.gmra.mxu0 %v596
    %v676 = vpop.f32.mrf.mxu0
    %v677 = vadd.f32 %v657, %v676
    %678 = vdwg.mxu0
    %679 = vmatpush.msra.mxu0 %v584
    %680 = vmatpush.msra.mxu0 %v576
    %681 = vmatpush.msra.mxu0 %v568
    %682 = vmatpush.msra.mxu0 %v560
    %683 = vmatpush.msra.mxu0 %v552
    %684 = vmatpush.msra.mxu0 %v544
    %685 = vmatpush.msra.mxu0 %v536
    %686 = vmatpush.msra.mxu0 %v528
    %687 = vmatpush.msra.mxu0 %v520
    %688 = vmatpush.msra.mxu0 %v512
    %689 = vmatpush.msra.mxu0 %v504
    %690 = vmatpush.msra.mxu0 %v496
    %691 = vmatpush.msra.mxu0 %v488
    %692 = vmatpush.msra.mxu0 %v480
    %693 = vmatpush.msra.mxu0 %v472
    %694 = vmatpush.msra.mxu0 %v464
    %695 = vmatmul.f32.gmra.mxu0 %v597
    %v696 = vpop.f32.mrf.mxu0
    %v697 = vadd.f32 %v677, %v696
    %698 = vdwg.mxu0
    %699 = vmatpush.msra.mxu0 %v201
    %700 = vmatpush.msra.mxu0 %v193
    %701 = vmatpush.msra.mxu0 %v185
    %702 = vmatpush.msra.mxu0 %v177
    %703 = vmatpush.msra.mxu0 %v169
    %704 = vmatpush.msra.mxu0 %v161
    %705 = vmatpush.msra.mxu0 %v153
    %706 = vmatpush.msra.mxu0 %v145
    %707 = vmatpush.msra.mxu0 %v137
    %708 = vmatpush.msra.mxu0 %v129
    %709 = vmatpush.msra.mxu0 %v121
    %710 = vmatpush.msra.mxu0 %v113
    %711 = vmatpush.msra.mxu0 %v105
    %712 = vmatpush.msra.mxu0 %v97
    %713 = vmatpush.msra.mxu0 %v89
    %714 = vmatpush.msra.mxu0 %v81
    %715 = vmatmul.f32.gmra.mxu0 %v594
    %v716 = vpop.f32.mrf.mxu0
    %v717 = vadd.f32 %v604, %v716
    %718 = vdwg.mxu0
    %719 = vmatpush.msra.mxu0 %v329
    %720 = vmatpush.msra.mxu0 %v321
    %721 = vmatpush.msra.mxu0 %v313
    %722 = vmatpush.msra.mxu0 %v305
    %723 = vmatpush.msra.mxu0 %v297
    %724 = vmatpush.msra.mxu0 %v289
    %725 = vmatpush.msra.mxu0 %v281
    %726 = vmatpush.msra.mxu0 %v273
    %727 = vmatpush.msra.mxu0 %v265
    %728 = vmatpush.msra.mxu0 %v257
    %729 = vmatpush.msra.mxu0 %v249
    %730 = vmatpush.msra.mxu0 %v241
    %731 = vmatpush.msra.mxu0 %v233
    %732 = vmatpush.msra.mxu0 %v225
    %733 = vmatpush.msra.mxu0 %v217
    %734 = vmatpush.msra.mxu0 %v209
    %735 = vmatmul.f32.gmra.mxu0 %v595
    %v736 = vpop.f32.mrf.mxu0
    %v737 = vadd.f32 %v717, %v736
    %738 = vdwg.mxu0
    %739 = vmatpush.msra.mxu0 %v457
    %740 = vmatpush.msra.mxu0 %v449
    %741 = vmatpush.msra.mxu0 %v441
    %742 = vmatpush.msra.mxu0 %v433
    %743 = vmatpush.msra.mxu0 %v425
    %744 = vmatpush.msra.mxu0 %v417
    %745 = vmatpush.msra.mxu0 %v409
    %746 = vmatpush.msra.mxu0 %v401
    %747 = vmatpush.msra.mxu0 %v393
    %748 = vmatpush.msra.mxu0 %v385
    %749 = vmatpush.msra.mxu0 %v377
    %750 = vmatpush.msra.mxu0 %v369
    %751 = vmatpush.msra.mxu0 %v361
    %752 = vmatpush.msra.mxu0 %v353
    %753 = vmatpush.msra.mxu0 %v345
    %754 = vmatpush.msra.mxu0 %v337
    %755 = vmatmul.f32.gmra.mxu0 %v596
    %v756 = vpop.f32.mrf.mxu0
    %v757 = vadd.f32 %v737, %v756
    %758 = vdwg.mxu0
    %759 = vmatpush.msra.mxu0 %v585
    %760 = vmatpush.msra.mxu0 %v577
    %761 = vmatpush.msra.mxu0 %v569
    %762 = vmatpush.msra.mxu0 %v561
    %763 = vmatpush.msra.mxu0 %v553
    %764 = vmatpush.msra.mxu0 %v545
    %765 = vmatpush.msra.mxu0 %v537
    %766 = vmatpush.msra.mxu0 %v529
    %767 = vmatpush.msra.mxu0 %v521
    %768 = vmatpush.msra.mxu0 %v513
    %769 = vmatpush.msra.mxu0 %v505
    %770 = vmatpush.msra.mxu0 %v497
    %771 = vmatpush.msra.mxu0 %v489
    %772 = vmatpush.msra.mxu0 %v481
    %773 = vmatpush.msra.mxu0 %v473
    %774 = vmatpush.msra.mxu0 %v465
    %775 = vmatmul.f32.gmra.mxu0 %v597
    %v776 = vpop.f32.mrf.mxu0
    %v777 = vadd.f32 %v757, %v776
    %778 = vdwg.mxu0
    %779 = vmatpush.msra.mxu0 %v202
    %780 = vmatpush.msra.mxu0 %v194
    %781 = vmatpush.msra.mxu0 %v186
    %782 = vmatpush.msra.mxu0 %v178
    %783 = vmatpush.msra.mxu0 %v170
    %784 = vmatpush.msra.mxu0 %v162
    %785 = vmatpush.msra.mxu0 %v154
    %786 = vmatpush.msra.mxu0 %v146
    %787 = vmatpush.msra.mxu0 %v138
    %788 = vmatpush.msra.mxu0 %v130
    %789 = vmatpush.msra.mxu0 %v122
    %790 = vmatpush.msra.mxu0 %v114
    %791 = vmatpush.msra.mxu0 %v106
    %792 = vmatpush.msra.mxu0 %v98
    %793 = vmatpush.msra.mxu0 %v90
    %794 = vmatpush.msra.mxu0 %v82
    %795 = vmatmul.f32.gmra.mxu0 %v594
    %v796 = vpop.f32.mrf.mxu0
    %v797 = vadd.f32 %v605, %v796
    %798 = vdwg.mxu0
    %799 = vmatpush.msra.mxu0 %v330
    %800 = vmatpush.msra.mxu0 %v322
    %801 = vmatpush.msra.mxu0 %v314
    %802 = vmatpush.msra.mxu0 %v306
    %803 = vmatpush.msra.mxu0 %v298
    %804 = vmatpush.msra.mxu0 %v290
    %805 = vmatpush.msra.mxu0 %v282
    %806 = vmatpush.msra.mxu0 %v274
    %807 = vmatpush.msra.mxu0 %v266
    %808 = vmatpush.msra.mxu0 %v258
    %809 = vmatpush.msra.mxu0 %v250
    %810 = vmatpush.msra.mxu0 %v242
    %811 = vmatpush.msra.mxu0 %v234
    %812 = vmatpush.msra.mxu0 %v226
    %813 = vmatpush.msra.mxu0 %v218
    %814 = vmatpush.msra.mxu0 %v210
    %815 = vmatmul.f32.gmra.mxu0 %v595
    %v816 = vpop.f32.mrf.mxu0
    %v817 = vadd.f32 %v797, %v816
    %818 = vdwg.mxu0
    %819 = vmatpush.msra.mxu0 %v458
    %820 = vmatpush.msra.mxu0 %v450
    %821 = vmatpush.msra.mxu0 %v442
    %822 = vmatpush.msra.mxu0 %v434
    %823 = vmatpush.msra.mxu0 %v426
    %824 = vmatpush.msra.mxu0 %v418
    %825 = vmatpush.msra.mxu0 %v410
    %826 = vmatpush.msra.mxu0 %v402
    %827 = vmatpush.msra.mxu0 %v394
    %828 = vmatpush.msra.mxu0 %v386
    %829 = vmatpush.msra.mxu0 %v378
    %830 = vmatpush.msra.mxu0 %v370
    %831 = vmatpush.msra.mxu0 %v362
    %832 = vmatpush.msra.mxu0 %v354
    %833 = vmatpush.msra.mxu0 %v346
    %834 = vmatpush.msra.mxu0 %v338
    %835 = vmatmul.f32.gmra.mxu0 %v596
    %v836 = vpop.f32.mrf.mxu0
    %v837 = vadd.f32 %v817, %v836
    %838 = vdwg.mxu0
    %839 = vmatpush.msra.mxu0 %v586
    %840 = vmatpush.msra.mxu0 %v578
    %841 = vmatpush.msra.mxu0 %v570
    %842 = vmatpush.msra.mxu0 %v562
    %843 = vmatpush.msra.mxu0 %v554
    %844 = vmatpush.msra.mxu0 %v546
    %845 = vmatpush.msra.mxu0 %v538
    %846 = vmatpush.msra.mxu0 %v530
    %847 = vmatpush.msra.mxu0 %v522
    %848 = vmatpush.msra.mxu0 %v514
    %849 = vmatpush.msra.mxu0 %v506
    %850 = vmatpush.msra.mxu0 %v498
    %851 = vmatpush.msra.mxu0 %v490
    %852 = vmatpush.msra.mxu0 %v482
    %853 = vmatpush.msra.mxu0 %v474
    %854 = vmatpush.msra.mxu0 %v466
    %855 = vmatmul.f32.gmra.mxu0 %v597
    %v856 = vpop.f32.mrf.mxu0
    %v857 = vadd.f32 %v837, %v856
    %858 = vdwg.mxu0
    %859 = vmatpush.msra.mxu0 %v203
    %860 = vmatpush.msra.mxu0 %v195
    %861 = vmatpush.msra.mxu0 %v187
    %862 = vmatpush.msra.mxu0 %v179
    %863 = vmatpush.msra.mxu0 %v171
    %864 = vmatpush.msra.mxu0 %v163
    %865 = vmatpush.msra.mxu0 %v155
    %866 = vmatpush.msra.mxu0 %v147
    %867 = vmatpush.msra.mxu0 %v139
    %868 = vmatpush.msra.mxu0 %v131
    %869 = vmatpush.msra.mxu0 %v123
    %870 = vmatpush.msra.mxu0 %v115
    %871 = vmatpush.msra.mxu0 %v107
    %872 = vmatpush.msra.mxu0 %v99
    %873 = vmatpush.msra.mxu0 %v91
    %874 = vmatpush.msra.mxu0 %v83
    %875 = vmatmul.f32.gmra.mxu0 %v594
    %v876 = vpop.f32.mrf.mxu0
    %v877 = vadd.f32 %v606, %v876
    %878 = vdwg.mxu0
    %879 = vmatpush.msra.mxu0 %v331
    %880 = vmatpush.msra.mxu0 %v323
    %881 = vmatpush.msra.mxu0 %v315
    %882 = vmatpush.msra.mxu0 %v307
    %883 = vmatpush.msra.mxu0 %v299
    %884 = vmatpush.msra.mxu0 %v291
    %885 = vmatpush.msra.mxu0 %v283
    %886 = vmatpush.msra.mxu0 %v275
    %887 = vmatpush.msra.mxu0 %v267
    %888 = vmatpush.msra.mxu0 %v259
    %889 = vmatpush.msra.mxu0 %v251
    %890 = vmatpush.msra.mxu0 %v243
    %891 = vmatpush.msra.mxu0 %v235
    %892 = vmatpush.msra.mxu0 %v227
    %893 = vmatpush.msra.mxu0 %v219
    %894 = vmatpush.msra.mxu0 %v211
    %895 = vmatmul.f32.gmra.mxu0 %v595
    %v896 = vpop.f32.mrf.mxu0
    %v897 = vadd.f32 %v877, %v896
    %898 = vdwg.mxu0
    %899 = vmatpush.msra.mxu0 %v459
    %900 = vmatpush.msra.mxu0 %v451
    %901 = vmatpush.msra.mxu0 %v443
    %902 = vmatpush.msra.mxu0 %v435
    %903 = vmatpush.msra.mxu0 %v427
    %904 = vmatpush.msra.mxu0 %v419
    %905 = vmatpush.msra.mxu0 %v411
    %906 = vmatpush.msra.mxu0 %v403
    %907 = vmatpush.msra.mxu0 %v395
    %908 = vmatpush.msra.mxu0 %v387
    %909 = vmatpush.msra.mxu0 %v379
    %910 = vmatpush.msra.mxu0 %v371
    %911 = vmatpush.msra.mxu0 %v363
    %912 = vmatpush.msra.mxu0 %v355
    %913 = vmatpush.msra.mxu0 %v347
    %914 = vmatpush.msra.mxu0 %v339
    %915 = vmatmul.f32.gmra.mxu0 %v596
    %v916 = vpop.f32.mrf.mxu0
    %v917 = vadd.f32 %v897, %v916
    %918 = vdwg.mxu0
    %919 = vmatpush.msra.mxu0 %v587
    %920 = vmatpush.msra.mxu0 %v579
    %921 = vmatpush.msra.mxu0 %v571
    %922 = vmatpush.msra.mxu0 %v563
    %923 = vmatpush.msra.mxu0 %v555
    %924 = vmatpush.msra.mxu0 %v547
    %925 = vmatpush.msra.mxu0 %v539
    %926 = vmatpush.msra.mxu0 %v531
    %927 = vmatpush.msra.mxu0 %v523
    %928 = vmatpush.msra.mxu0 %v515
    %929 = vmatpush.msra.mxu0 %v507
    %930 = vmatpush.msra.mxu0 %v499
    %931 = vmatpush.msra.mxu0 %v491
    %932 = vmatpush.msra.mxu0 %v483
    %933 = vmatpush.msra.mxu0 %v475
    %934 = vmatpush.msra.mxu0 %v467
    %935 = vmatmul.f32.gmra.mxu0 %v597
    %v936 = vpop.f32.mrf.mxu0
    %v937 = vadd.f32 %v917, %v936
    %938 = vdwg.mxu0
    %939 = vmatpush.msra.mxu0 %v204
    %940 = vmatpush.msra.mxu0 %v196
    %941 = vmatpush.msra.mxu0 %v188
    %942 = vmatpush.msra.mxu0 %v180
    %943 = vmatpush.msra.mxu0 %v172
    %944 = vmatpush.msra.mxu0 %v164
    %945 = vmatpush.msra.mxu0 %v156
    %946 = vmatpush.msra.mxu0 %v148
    %947 = vmatpush.msra.mxu0 %v140
    %948 = vmatpush.msra.mxu0 %v132
    %949 = vmatpush.msra.mxu0 %v124
    %950 = vmatpush.msra.mxu0 %v116
    %951 = vmatpush.msra.mxu0 %v108
    %952 = vmatpush.msra.mxu0 %v100
    %953 = vmatpush.msra.mxu0 %v92
    %954 = vmatpush.msra.mxu0 %v84
    %955 = vmatmul.f32.gmra.mxu0 %v594
    %v956 = vpop.f32.mrf.mxu0
    %v957 = vadd.f32 %v607, %v956
    %958 = vdwg.mxu0
    %959 = vmatpush.msra.mxu0 %v332
    %960 = vmatpush.msra.mxu0 %v324
    %961 = vmatpush.msra.mxu0 %v316
    %962 = vmatpush.msra.mxu0 %v308
    %963 = vmatpush.msra.mxu0 %v300
    %964 = vmatpush.msra.mxu0 %v292
    %965 = vmatpush.msra.mxu0 %v284
    %966 = vmatpush.msra.mxu0 %v276
    %967 = vmatpush.msra.mxu0 %v268
    %968 = vmatpush.msra.mxu0 %v260
    %969 = vmatpush.msra.mxu0 %v252
    %970 = vmatpush.msra.mxu0 %v244
    %971 = vmatpush.msra.mxu0 %v236
    %972 = vmatpush.msra.mxu0 %v228
    %973 = vmatpush.msra.mxu0 %v220
    %974 = vmatpush.msra.mxu0 %v212
    %975 = vmatmul.f32.gmra.mxu0 %v595
    %v976 = vpop.f32.mrf.mxu0
    %v977 = vadd.f32 %v957, %v976
    %978 = vdwg.mxu0
    %979 = vmatpush.msra.mxu0 %v460
    %980 = vmatpush.msra.mxu0 %v452
    %981 = vmatpush.msra.mxu0 %v444
    %982 = vmatpush.msra.mxu0 %v436
    %983 = vmatpush.msra.mxu0 %v428
    %984 = vmatpush.msra.mxu0 %v420
    %985 = vmatpush.msra.mxu0 %v412
    %986 = vmatpush.msra.mxu0 %v404
    %987 = vmatpush.msra.mxu0 %v396
    %988 = vmatpush.msra.mxu0 %v388
    %989 = vmatpush.msra.mxu0 %v380
    %990 = vmatpush.msra.mxu0 %v372
    %991 = vmatpush.msra.mxu0 %v364
    %992 = vmatpush.msra.mxu0 %v356
    %993 = vmatpush.msra.mxu0 %v348
    %994 = vmatpush.msra.mxu0 %v340
    %995 = vmatmul.f32.gmra.mxu0 %v596
    %v996 = vpop.f32.mrf.mxu0
    %v997 = vadd.f32 %v977, %v996
    %998 = vdwg.mxu0
    %999 = vmatpush.msra.mxu0 %v588
    %1000 = vmatpush.msra.mxu0 %v580
    %1001 = vmatpush.msra.mxu0 %v572
    %1002 = vmatpush.msra.mxu0 %v564
    %1003 = vmatpush.msra.mxu0 %v556
    %1004 = vmatpush.msra.mxu0 %v548
    %1005 = vmatpush.msra.mxu0 %v540
    %1006 = vmatpush.msra.mxu0 %v532
    %1007 = vmatpush.msra.mxu0 %v524
    %1008 = vmatpush.msra.mxu0 %v516
    %1009 = vmatpush.msra.mxu0 %v508
    %1010 = vmatpush.msra.mxu0 %v500
    %1011 = vmatpush.msra.mxu0 %v492
    %1012 = vmatpush.msra.mxu0 %v484
    %1013 = vmatpush.msra.mxu0 %v476
    %1014 = vmatpush.msra.mxu0 %v468
    %1015 = vmatmul.f32.gmra.mxu0 %v597
    %v1016 = vpop.f32.mrf.mxu0
    %v1017 = vadd.f32 %v997, %v1016
    %1018 = vdwg.mxu0
    %1019 = vmatpush.msra.mxu0 %v205
    %1020 = vmatpush.msra.mxu0 %v197
    %1021 = vmatpush.msra.mxu0 %v189
    %1022 = vmatpush.msra.mxu0 %v181
    %1023 = vmatpush.msra.mxu0 %v173
    %1024 = vmatpush.msra.mxu0 %v165
    %1025 = vmatpush.msra.mxu0 %v157
    %1026 = vmatpush.msra.mxu0 %v149
    %1027 = vmatpush.msra.mxu0 %v141
    %1028 = vmatpush.msra.mxu0 %v133
    %1029 = vmatpush.msra.mxu0 %v125
    %1030 = vmatpush.msra.mxu0 %v117
    %1031 = vmatpush.msra.mxu0 %v109
    %1032 = vmatpush.msra.mxu0 %v101
    %1033 = vmatpush.msra.mxu0 %v93
    %1034 = vmatpush.msra.mxu0 %v85
    %1035 = vmatmul.f32.gmra.mxu0 %v594
    %v1036 = vpop.f32.mrf.mxu0
    %v1037 = vadd.f32 %v608, %v1036
    %1038 = vdwg.mxu0
    %1039 = vmatpush.msra.mxu0 %v333
    %1040 = vmatpush.msra.mxu0 %v325
    %1041 = vmatpush.msra.mxu0 %v317
    %1042 = vmatpush.msra.mxu0 %v309
    %1043 = vmatpush.msra.mxu0 %v301
    %1044 = vmatpush.msra.mxu0 %v293
    %1045 = vmatpush.msra.mxu0 %v285
    %1046 = vmatpush.msra.mxu0 %v277
    %1047 = vmatpush.msra.mxu0 %v269
    %1048 = vmatpush.msra.mxu0 %v261
    %1049 = vmatpush.msra.mxu0 %v253
    %1050 = vmatpush.msra.mxu0 %v245
    %1051 = vmatpush.msra.mxu0 %v237
    %1052 = vmatpush.msra.mxu0 %v229
    %1053 = vmatpush.msra.mxu0 %v221
    %1054 = vmatpush.msra.mxu0 %v213
    %1055 = vmatmul.f32.gmra.mxu0 %v595
    %v1056 = vpop.f32.mrf.mxu0
    %v1057 = vadd.f32 %v1037, %v1056
    %1058 = vdwg.mxu0
    %1059 = vmatpush.msra.mxu0 %v461
    %1060 = vmatpush.msra.mxu0 %v453
    %1061 = vmatpush.msra.mxu0 %v445
    %1062 = vmatpush.msra.mxu0 %v437
    %1063 = vmatpush.msra.mxu0 %v429
    %1064 = vmatpush.msra.mxu0 %v421
    %1065 = vmatpush.msra.mxu0 %v413
    %1066 = vmatpush.msra.mxu0 %v405
    %1067 = vmatpush.msra.mxu0 %v397
    %1068 = vmatpush.msra.mxu0 %v389
    %1069 = vmatpush.msra.mxu0 %v381
    %1070 = vmatpush.msra.mxu0 %v373
    %1071 = vmatpush.msra.mxu0 %v365
    %1072 = vmatpush.msra.mxu0 %v357
    %1073 = vmatpush.msra.mxu0 %v349
    %1074 = vmatpush.msra.mxu0 %v341
    %1075 = vmatmul.f32.gmra.mxu0 %v596
    %v1076 = vpop.f32.mrf.mxu0
    %v1077 = vadd.f32 %v1057, %v1076
    %1078 = vdwg.mxu0
    %1079 = vmatpush.msra.mxu0 %v589
    %1080 = vmatpush.msra.mxu0 %v581
    %1081 = vmatpush.msra.mxu0 %v573
    %1082 = vmatpush.msra.mxu0 %v565
    %1083 = vmatpush.msra.mxu0 %v557
    %1084 = vmatpush.msra.mxu0 %v549
    %1085 = vmatpush.msra.mxu0 %v541
    %1086 = vmatpush.msra.mxu0 %v533
    %1087 = vmatpush.msra.mxu0 %v525
    %1088 = vmatpush.msra.mxu0 %v517
    %1089 = vmatpush.msra.mxu0 %v509
    %1090 = vmatpush.msra.mxu0 %v501
    %1091 = vmatpush.msra.mxu0 %v493
    %1092 = vmatpush.msra.mxu0 %v485
    %1093 = vmatpush.msra.mxu0 %v477
    %1094 = vmatpush.msra.mxu0 %v469
    %1095 = vmatmul.f32.gmra.mxu0 %v597
    %v1096 = vpop.f32.mrf.mxu0
    %v1097 = vadd.f32 %v1077, %v1096
    %1098 = vdwg.mxu0
    %1099 = vmatpush.msra.mxu0 %v206
    %1100 = vmatpush.msra.mxu0 %v198
    %1101 = vmatpush.msra.mxu0 %v190
    %1102 = vmatpush.msra.mxu0 %v182
    %1103 = vmatpush.msra.mxu0 %v174
    %1104 = vmatpush.msra.mxu0 %v166
    %1105 = vmatpush.msra.mxu0 %v158
    %1106 = vmatpush.msra.mxu0 %v150
    %1107 = vmatpush.msra.mxu0 %v142
    %1108 = vmatpush.msra.mxu0 %v134
    %1109 = vmatpush.msra.mxu0 %v126
    %1110 = vmatpush.msra.mxu0 %v118
    %1111 = vmatpush.msra.mxu0 %v110
    %1112 = vmatpush.msra.mxu0 %v102
    %1113 = vmatpush.msra.mxu0 %v94
    %1114 = vmatpush.msra.mxu0 %v86
    %1115 = vmatmul.f32.gmra.mxu0 %v594
    %v1116 = vpop.f32.mrf.mxu0
    %v1117 = vadd.f32 %v609, %v1116
    %1118 = vdwg.mxu0
    %1119 = vmatpush.msra.mxu0 %v334
    %1120 = vmatpush.msra.mxu0 %v326
    %1121 = vmatpush.msra.mxu0 %v318
    %1122 = vmatpush.msra.mxu0 %v310
    %1123 = vmatpush.msra.mxu0 %v302
    %1124 = vmatpush.msra.mxu0 %v294
    %1125 = vmatpush.msra.mxu0 %v286
    %1126 = vmatpush.msra.mxu0 %v278
    %1127 = vmatpush.msra.mxu0 %v270
    %1128 = vmatpush.msra.mxu0 %v262
    %1129 = vmatpush.msra.mxu0 %v254
    %1130 = vmatpush.msra.mxu0 %v246
    %1131 = vmatpush.msra.mxu0 %v238
    %1132 = vmatpush.msra.mxu0 %v230
    %1133 = vmatpush.msra.mxu0 %v222
    %1134 = vmatpush.msra.mxu0 %v214
    %1135 = vmatmul.f32.gmra.mxu0 %v595
    %v1136 = vpop.f32.mrf.mxu0
    %v1137 = vadd.f32 %v1117, %v1136
    %1138 = vdwg.mxu0
    %1139 = vmatpush.msra.mxu0 %v462
    %1140 = vmatpush.msra.mxu0 %v454
    %1141 = vmatpush.msra.mxu0 %v446
    %1142 = vmatpush.msra.mxu0 %v438
    %1143 = vmatpush.msra.mxu0 %v430
    %1144 = vmatpush.msra.mxu0 %v422
    %1145 = vmatpush.msra.mxu0 %v414
    %1146 = vmatpush.msra.mxu0 %v406
    %1147 = vmatpush.msra.mxu0 %v398
    %1148 = vmatpush.msra.mxu0 %v390
    %1149 = vmatpush.msra.mxu0 %v382
    %1150 = vmatpush.msra.mxu0 %v374
    %1151 = vmatpush.msra.mxu0 %v366
    %1152 = vmatpush.msra.mxu0 %v358
    %1153 = vmatpush.msra.mxu0 %v350
    %1154 = vmatpush.msra.mxu0 %v342
    %1155 = vmatmul.f32.gmra.mxu0 %v596
    %v1156 = vpop.f32.mrf.mxu0
    %v1157 = vadd.f32 %v1137, %v1156
    %1158 = vdwg.mxu0
    %1159 = vmatpush.msra.mxu0 %v590
    %1160 = vmatpush.msra.mxu0 %v582
    %1161 = vmatpush.msra.mxu0 %v574
    %1162 = vmatpush.msra.mxu0 %v566
    %1163 = vmatpush.msra.mxu0 %v558
    %1164 = vmatpush.msra.mxu0 %v550
    %1165 = vmatpush.msra.mxu0 %v542
    %1166 = vmatpush.msra.mxu0 %v534
    %1167 = vmatpush.msra.mxu0 %v526
    %1168 = vmatpush.msra.mxu0 %v518
    %1169 = vmatpush.msra.mxu0 %v510
    %1170 = vmatpush.msra.mxu0 %v502
    %1171 = vmatpush.msra.mxu0 %v494
    %1172 = vmatpush.msra.mxu0 %v486
    %1173 = vmatpush.msra.mxu0 %v478
    %1174 = vmatpush.msra.mxu0 %v470
    %1175 = vmatmul.f32.gmra.mxu0 %v597
    %v1176 = vpop.f32.mrf.mxu0
    %v1177 = vadd.f32 %v1157, %v1176
    %1178 = vdwg.mxu0
    %1179 = vmatpush.msra.mxu0 %v207
    %1180 = vmatpush.msra.mxu0 %v199
    %1181 = vmatpush.msra.mxu0 %v191
    %1182 = vmatpush.msra.mxu0 %v183
    %1183 = vmatpush.msra.mxu0 %v175
    %1184 = vmatpush.msra.mxu0 %v167
    %1185 = vmatpush.msra.mxu0 %v159
    %1186 = vmatpush.msra.mxu0 %v151
    %1187 = vmatpush.msra.mxu0 %v143
    %1188 = vmatpush.msra.mxu0 %v135
    %1189 = vmatpush.msra.mxu0 %v127
    %1190 = vmatpush.msra.mxu0 %v119
    %1191 = vmatpush.msra.mxu0 %v111
    %1192 = vmatpush.msra.mxu0 %v103
    %1193 = vmatpush.msra.mxu0 %v95
    %1194 = vmatpush.msra.mxu0 %v87
    %1195 = vmatmul.f32.gmra.mxu0 %v594
    %v1196 = vpop.f32.mrf.mxu0
    %v1197 = vadd.f32 %v610, %v1196
    %1198 = vdwg.mxu0
    %1199 = vmatpush.msra.mxu0 %v335
    %1200 = vmatpush.msra.mxu0 %v327
    %1201 = vmatpush.msra.mxu0 %v319
    %1202 = vmatpush.msra.mxu0 %v311
    %1203 = vmatpush.msra.mxu0 %v303
    %1204 = vmatpush.msra.mxu0 %v295
    %1205 = vmatpush.msra.mxu0 %v287
    %1206 = vmatpush.msra.mxu0 %v279
    %1207 = vmatpush.msra.mxu0 %v271
    %1208 = vmatpush.msra.mxu0 %v263
    %1209 = vmatpush.msra.mxu0 %v255
    %1210 = vmatpush.msra.mxu0 %v247
    %1211 = vmatpush.msra.mxu0 %v239
    %1212 = vmatpush.msra.mxu0 %v231
    %1213 = vmatpush.msra.mxu0 %v223
    %1214 = vmatpush.msra.mxu0 %v215
    %1215 = vmatmul.f32.gmra.mxu0 %v595
    %v1216 = vpop.f32.mrf.mxu0
    %v1217 = vadd.f32 %v1197, %v1216
    %1218 = vdwg.mxu0
    %1219 = vmatpush.msra.mxu0 %v463
    %1220 = vmatpush.msra.mxu0 %v455
    %1221 = vmatpush.msra.mxu0 %v447
    %1222 = vmatpush.msra.mxu0 %v439
    %1223 = vmatpush.msra.mxu0 %v431
    %1224 = vmatpush.msra.mxu0 %v423
    %1225 = vmatpush.msra.mxu0 %v415
    %1226 = vmatpush.msra.mxu0 %v407
    %1227 = vmatpush.msra.mxu0 %v399
    %1228 = vmatpush.msra.mxu0 %v391
    %1229 = vmatpush.msra.mxu0 %v383
    %1230 = vmatpush.msra.mxu0 %v375
    %1231 = vmatpush.msra.mxu0 %v367
    %1232 = vmatpush.msra.mxu0 %v359
    %1233 = vmatpush.msra.mxu0 %v351
    %1234 = vmatpush.msra.mxu0 %v343
    %1235 = vmatmul.f32.gmra.mxu0 %v596
    %v1236 = vpop.f32.mrf.mxu0
    %v1237 = vadd.f32 %v1217, %v1236
    %1238 = vdwg.mxu0
    %1239 = vmatpush.msra.mxu0 %v591
    %1240 = vmatpush.msra.mxu0 %v583
    %1241 = vmatpush.msra.mxu0 %v575
    %1242 = vmatpush.msra.mxu0 %v567
    %1243 = vmatpush.msra.mxu0 %v559
    %1244 = vmatpush.msra.mxu0 %v551
    %1245 = vmatpush.msra.mxu0 %v543
    %1246 = vmatpush.msra.mxu0 %v535
    %1247 = vmatpush.msra.mxu0 %v527
    %1248 = vmatpush.msra.mxu0 %v519
    %1249 = vmatpush.msra.mxu0 %v511
    %1250 = vmatpush.msra.mxu0 %v503
    %1251 = vmatpush.msra.mxu0 %v495
    %1252 = vmatpush.msra.mxu0 %v487
    %1253 = vmatpush.msra.mxu0 %v479
    %1254 = vmatpush.msra.mxu0 %v471
    %1255 = vmatmul.f32.gmra.mxu0 %v597
    %v1256 = vpop.f32.mrf.mxu0
    %v1257 = vadd.f32 %v1237, %v1256
    %1258 = vdwg.mxu0
    %v1259 = vmax.f32 %v697, 0.0
    %v1260 = vmax.f32 %v777, 0.0
    %v1261 = vmax.f32 %v857, 0.0
    %v1262 = vmax.f32 %v937, 0.0
    %v1263 = vmax.f32 %v1017, 0.0
    %v1264 = vmax.f32 %v1097, 0.0
    %v1265 = vmax.f32 %v1177, 0.0
    %v1266 = vmax.f32 %v1257, 0.0
    %v1267 = vld [vmem:[#allocation6] sm:$0xff]
    %v1268 = vld [vmem:[#allocation6 + $0x8] sm:$0xff]
    %v1269 = vld [vmem:[#allocation6 + $0x10] sm:$0xff]
    %v1270 = vld [vmem:[#allocation6 + $0x18] sm:$0xff]
    %v1271 = vld [vmem:[#allocation6 + $0x20] sm:$0xff]
    %v1272 = vld [vmem:[#allocation6 + $0x28] sm:$0xff]
    %v1273 = vld [vmem:[#allocation6 + $0x30] sm:$0xff]
    %v1274 = vld [vmem:[#allocation6 + $0x38] sm:$0xff]
    %v1275 = vld [vmem:[#allocation6 + $0x40] sm:$0xff]
    %v1276 = vld [vmem:[#allocation6 + $0x48] sm:$0xff]
    %v1277 = vld [vmem:[#allocation6 + $0x50] sm:$0xff]
    %v1278 = vld [vmem:[#allocation6 + $0x58] sm:$0xff]
    %v1279 = vld [vmem:[#allocation6 + $0x60] sm:$0xff]
    %v1280 = vld [vmem:[#allocation6 + $0x68] sm:$0xff]
    %v1281 = vld [vmem:[#allocation6 + $0x70] sm:$0xff]
    %v1282 = vld [vmem:[#allocation6 + $0x78] sm:$0xff]
    %v1283 = vld [vmem:[#allocation6 + $0x80] sm:$0xff]
    %v1284 = vld [vmem:[#allocation6 + $0x88] sm:$0xff]
    %v1285 = vld [vmem:[#allocation6 + $0x90] sm:$0xff]
    %v1286 = vld [vmem:[#allocation6 + $0x98] sm:$0xff]
    %v1287 = vld [vmem:[#allocation6 + $0xa0] sm:$0xff]
    %v1288 = vld [vmem:[#allocation6 + $0xa8] sm:$0xff]
    %v1289 = vld [vmem:[#allocation6 + $0xb0] sm:$0xff]
    %v1290 = vld [vmem:[#allocation6 + $0xb8] sm:$0xff]
    %v1291 = vld [vmem:[#allocation6 + $0xc0] sm:$0xff]
    %v1292 = vld [vmem:[#allocation6 + $0xc8] sm:$0xff]
    %v1293 = vld [vmem:[#allocation6 + $0xd0] sm:$0xff]
    %v1294 = vld [vmem:[#allocation6 + $0xd8] sm:$0xff]
    %v1295 = vld [vmem:[#allocation6 + $0xe0] sm:$0xff]
    %v1296 = vld [vmem:[#allocation6 + $0xe8] sm:$0xff]
    %v1297 = vld [vmem:[#allocation6 + $0xf0] sm:$0xff]
    %v1298 = vld [vmem:[#allocation6 + $0xf8] sm:$0xff]
    %v1299 = vld [vmem:[#allocation6 + $0x100] sm:$0xff]
    %v1300 = vld [vmem:[#allocation6 + $0x108] sm:$0xff]
    %v1301 = vld [vmem:[#allocation6 + $0x110] sm:$0xff]
    %v1302 = vld [vmem:[#allocation6 + $0x118] sm:$0xff]
    %v1303 = vld [vmem:[#allocation6 + $0x120] sm:$0xff]
    %v1304 = vld [vmem:[#allocation6 + $0x128] sm:$0xff]
    %v1305 = vld [vmem:[#allocation6 + $0x130] sm:$0xff]
    %v1306 = vld [vmem:[#allocation6 + $0x138] sm:$0xff]
    %v1307 = vld [vmem:[#allocation6 + $0x140] sm:$0xff]
    %v1308 = vld [vmem:[#allocation6 + $0x148] sm:$0xff]
    %v1309 = vld [vmem:[#allocation6 + $0x150] sm:$0xff]
    %v1310 = vld [vmem:[#allocation6 + $0x158] sm:$0xff]
    %v1311 = vld [vmem:[#allocation6 + $0x160] sm:$0xff]
    %v1312 = vld [vmem:[#allocation6 + $0x168] sm:$0xff]
    %v1313 = vld [vmem:[#allocation6 + $0x170] sm:$0xff]
    %v1314 = vld [vmem:[#allocation6 + $0x178] sm:$0xff]
    %v1315 = vld [vmem:[#allocation6 + $0x180] sm:$0xff]
    %v1316 = vld [vmem:[#allocation6 + $0x188] sm:$0xff]
    %v1317 = vld [vmem:[#allocation6 + $0x190] sm:$0xff]
    %v1318 = vld [vmem:[#allocation6 + $0x198] sm:$0xff]
    %v1319 = vld [vmem:[#allocation6 + $0x1a0] sm:$0xff]
    %v1320 = vld [vmem:[#allocation6 + $0x1a8] sm:$0xff]
    %v1321 = vld [vmem:[#allocation6 + $0x1b0] sm:$0xff]
    %v1322 = vld [vmem:[#allocation6 + $0x1b8] sm:$0xff]
    %v1323 = vld [vmem:[#allocation6 + $0x1c0] sm:$0xff]
    %v1324 = vld [vmem:[#allocation6 + $0x1c8] sm:$0xff]
    %v1325 = vld [vmem:[#allocation6 + $0x1d0] sm:$0xff]
    %v1326 = vld [vmem:[#allocation6 + $0x1d8] sm:$0xff]
    %v1327 = vld [vmem:[#allocation6 + $0x1e0] sm:$0xff]
    %v1328 = vld [vmem:[#allocation6 + $0x1e8] sm:$0xff]
    %v1329 = vld [vmem:[#allocation6 + $0x1f0] sm:$0xff]
    %v1330 = vld [vmem:[#allocation6 + $0x1f8] sm:$0xff]
    %v1331 = vld [vmem:[#allocation6 + $0x200] sm:$0xff]
    %v1332 = vld [vmem:[#allocation6 + $0x208] sm:$0xff]
    %v1333 = vld [vmem:[#allocation6 + $0x210] sm:$0xff]
    %v1334 = vld [vmem:[#allocation6 + $0x218] sm:$0xff]
    %v1335 = vld [vmem:[#allocation6 + $0x220] sm:$0xff]
    %v1336 = vld [vmem:[#allocation6 + $0x228] sm:$0xff]
    %v1337 = vld [vmem:[#allocation6 + $0x230] sm:$0xff]
    %v1338 = vld [vmem:[#allocation6 + $0x238] sm:$0xff]
    %v1339 = vld [vmem:[#allocation6 + $0x240] sm:$0xff]
    %v1340 = vld [vmem:[#allocation6 + $0x248] sm:$0xff]
    %v1341 = vld [vmem:[#allocation6 + $0x250] sm:$0xff]
    %v1342 = vld [vmem:[#allocation6 + $0x258] sm:$0xff]
    %v1343 = vld [vmem:[#allocation6 + $0x260] sm:$0xff]
    %v1344 = vld [vmem:[#allocation6 + $0x268] sm:$0xff]
    %v1345 = vld [vmem:[#allocation6 + $0x270] sm:$0xff]
    %v1346 = vld [vmem:[#allocation6 + $0x278] sm:$0xff]
    %v1347 = vld [vmem:[#allocation6 + $0x280] sm:$0xff]
    %v1348 = vld [vmem:[#allocation6 + $0x288] sm:$0xff]
    %v1349 = vld [vmem:[#allocation6 + $0x290] sm:$0xff]
    %v1350 = vld [vmem:[#allocation6 + $0x298] sm:$0xff]
    %v1351 = vld [vmem:[#allocation6 + $0x2a0] sm:$0xff]
    %v1352 = vld [vmem:[#allocation6 + $0x2a8] sm:$0xff]
    %v1353 = vld [vmem:[#allocation6 + $0x2b0] sm:$0xff]
    %v1354 = vld [vmem:[#allocation6 + $0x2b8] sm:$0xff]
    %v1355 = vld [vmem:[#allocation6 + $0x2c0] sm:$0xff]
    %v1356 = vld [vmem:[#allocation6 + $0x2c8] sm:$0xff]
    %v1357 = vld [vmem:[#allocation6 + $0x2d0] sm:$0xff]
    %v1358 = vld [vmem:[#allocation6 + $0x2d8] sm:$0xff]
    %v1359 = vld [vmem:[#allocation6 + $0x2e0] sm:$0xff]
    %v1360 = vld [vmem:[#allocation6 + $0x2e8] sm:$0xff]
    %v1361 = vld [vmem:[#allocation6 + $0x2f0] sm:$0xff]
    %v1362 = vld [vmem:[#allocation6 + $0x2f8] sm:$0xff]
    %v1363 = vld [vmem:[#allocation6 + $0x300] sm:$0xff]
    %v1364 = vld [vmem:[#allocation6 + $0x308] sm:$0xff]
    %v1365 = vld [vmem:[#allocation6 + $0x310] sm:$0xff]
    %v1366 = vld [vmem:[#allocation6 + $0x318] sm:$0xff]
    %v1367 = vld [vmem:[#allocation6 + $0x320] sm:$0xff]
    %v1368 = vld [vmem:[#allocation6 + $0x328] sm:$0xff]
    %v1369 = vld [vmem:[#allocation6 + $0x330] sm:$0xff]
    %v1370 = vld [vmem:[#allocation6 + $0x338] sm:$0xff]
    %v1371 = vld [vmem:[#allocation6 + $0x340] sm:$0xff]
    %v1372 = vld [vmem:[#allocation6 + $0x348] sm:$0xff]
    %v1373 = vld [vmem:[#allocation6 + $0x350] sm:$0xff]
    %v1374 = vld [vmem:[#allocation6 + $0x358] sm:$0xff]
    %v1375 = vld [vmem:[#allocation6 + $0x360] sm:$0xff]
    %v1376 = vld [vmem:[#allocation6 + $0x368] sm:$0xff]
    %v1377 = vld [vmem:[#allocation6 + $0x370] sm:$0xff]
    %v1378 = vld [vmem:[#allocation6 + $0x378] sm:$0xff]
    %v1379 = vld [vmem:[#allocation6 + $0x380] sm:$0xff]
    %v1380 = vld [vmem:[#allocation6 + $0x388] sm:$0xff]
    %v1381 = vld [vmem:[#allocation6 + $0x390] sm:$0xff]
    %v1382 = vld [vmem:[#allocation6 + $0x398] sm:$0xff]
    %v1383 = vld [vmem:[#allocation6 + $0x3a0] sm:$0xff]
    %v1384 = vld [vmem:[#allocation6 + $0x3a8] sm:$0xff]
    %v1385 = vld [vmem:[#allocation6 + $0x3b0] sm:$0xff]
    %v1386 = vld [vmem:[#allocation6 + $0x3b8] sm:$0xff]
    %v1387 = vld [vmem:[#allocation6 + $0x3c0] sm:$0xff]
    %v1388 = vld [vmem:[#allocation6 + $0x3c8] sm:$0xff]
    %v1389 = vld [vmem:[#allocation6 + $0x3d0] sm:$0xff]
    %v1390 = vld [vmem:[#allocation6 + $0x3d8] sm:$0xff]
    %v1391 = vld [vmem:[#allocation6 + $0x3e0] sm:$0xff]
    %v1392 = vld [vmem:[#allocation6 + $0x3e8] sm:$0xff]
    %v1393 = vld [vmem:[#allocation6 + $0x3f0] sm:$0xff]
    %v1394 = vld [vmem:[#allocation6 + $0x3f8] sm:$0xff]
    %v1395 = vld [vmem:[#allocation7] sm:$0x1]
    %1396 = vmatpush.msra.mxu0 %v1282
    %1397 = vmatpush.msra.mxu0 %v1281
    %1398 = vmatpush.msra.mxu0 %v1280
    %1399 = vmatpush.msra.mxu0 %v1279
    %1400 = vmatpush.msra.mxu0 %v1278
    %1401 = vmatpush.msra.mxu0 %v1277
    %1402 = vmatpush.msra.mxu0 %v1276
    %1403 = vmatpush.msra.mxu0 %v1275
    %1404 = vmatpush.msra.mxu0 %v1274
    %1405 = vmatpush.msra.mxu0 %v1273
    %1406 = vmatpush.msra.mxu0 %v1272
    %1407 = vmatpush.msra.mxu0 %v1271
    %1408 = vmatpush.msra.mxu0 %v1270
    %1409 = vmatpush.msra.mxu0 %v1269
    %1410 = vmatpush.msra.mxu0 %v1268
    %1411 = vmatpush.msra.mxu0 %v1267
    %1412 = vmatmul.f32.gmra.mxu0 %v1259
    %v1413 = vpop.f32.mrf.mxu0
    %v1414 = vadd.f32 %v1395, %v1413
    %1415 = vdwg.mxu0
    %1416 = vmatpush.msra.mxu0 %v1298
    %1417 = vmatpush.msra.mxu0 %v1297
    %1418 = vmatpush.msra.mxu0 %v1296
    %1419 = vmatpush.msra.mxu0 %v1295
    %1420 = vmatpush.msra.mxu0 %v1294
    %1421 = vmatpush.msra.mxu0 %v1293
    %1422 = vmatpush.msra.mxu0 %v1292
    %1423 = vmatpush.msra.mxu0 %v1291
    %1424 = vmatpush.msra.mxu0 %v1290
    %1425 = vmatpush.msra.mxu0 %v1289
    %1426 = vmatpush.msra.mxu0 %v1288
    %1427 = vmatpush.msra.mxu0 %v1287
    %1428 = vmatpush.msra.mxu0 %v1286
    %1429 = vmatpush.msra.mxu0 %v1285
    %1430 = vmatpush.msra.mxu0 %v1284
    %1431 = vmatpush.msra.mxu0 %v1283
    %1432 = vmatmul.f32.gmra.mxu0 %v1260
    %v1433 = vpop.f32.mrf.mxu0
    %v1434 = vadd.f32 %v1414, %v1433
    %1435 = vdwg.mxu0
    %1436 = vmatpush.msra.mxu0 %v1314
    %1437 = vmatpush.msra.mxu0 %v1313
    %1438 = vmatpush.msra.mxu0 %v1312
    %1439 = vmatpush.msra.mxu0 %v1311
    %1440 = vmatpush.msra.mxu0 %v1310
    %1441 = vmatpush.msra.mxu0 %v1309
    %1442 = vmatpush.msra.mxu0 %v1308
    %1443 = vmatpush.msra.mxu0 %v1307
    %1444 = vmatpush.msra.mxu0 %v1306
    %1445 = vmatpush.msra.mxu0 %v1305
    %1446 = vmatpush.msra.mxu0 %v1304
    %1447 = vmatpush.msra.mxu0 %v1303
    %1448 = vmatpush.msra.mxu0 %v1302
    %1449 = vmatpush.msra.mxu0 %v1301
    %1450 = vmatpush.msra.mxu0 %v1300
    %1451 = vmatpush.msra.mxu0 %v1299
    %1452 = vmatmul.f32.gmra.mxu0 %v1261
    %v1453 = vpop.f32.mrf.mxu0
    %v1454 = vadd.f32 %v1434, %v1453
    %1455 = vdwg.mxu0
    %1456 = vmatpush.msra.mxu0 %v1330
    %1457 = vmatpush.msra.mxu0 %v1329
    %1458 = vmatpush.msra.mxu0 %v1328
    %1459 = vmatpush.msra.mxu0 %v1327
    %1460 = vmatpush.msra.mxu0 %v1326
    %1461 = vmatpush.msra.mxu0 %v1325
    %1462 = vmatpush.msra.mxu0 %v1324
    %1463 = vmatpush.msra.mxu0 %v1323
    %1464 = vmatpush.msra.mxu0 %v1322
    %1465 = vmatpush.msra.mxu0 %v1321
    %1466 = vmatpush.msra.mxu0 %v1320
    %1467 = vmatpush.msra.mxu0 %v1319
    %1468 = vmatpush.msra.mxu0 %v1318
    %1469 = vmatpush.msra.mxu0 %v1317
    %1470 = vmatpush.msra.mxu0 %v1316
    %1471 = vmatpush.msra.mxu0 %v1315
    %1472 = vmatmul.f32.gmra.mxu0 %v1262
    %v1473 = vpop.f32.mrf.mxu0
    %v1474 = vadd.f32 %v1454, %v1473
    %1475 = vdwg.mxu0
    %1476 = vmatpush.msra.mxu0 %v1346
    %1477 = vmatpush.msra.mxu0 %v1345
    %1478 = vmatpush.msra.mxu0 %v1344
    %1479 = vmatpush.msra.mxu0 %v1343
    %1480 = vmatpush.msra.mxu0 %v1342
    %1481 = vmatpush.msra.mxu0 %v1341
    %1482 = vmatpush.msra.mxu0 %v1340
    %1483 = vmatpush.msra.mxu0 %v1339
    %1484 = vmatpush.msra.mxu0 %v1338
    %1485 = vmatpush.msra.mxu0 %v1337
    %1486 = vmatpush.msra.mxu0 %v1336
    %1487 = vmatpush.msra.mxu0 %v1335
    %1488 = vmatpush.msra.mxu0 %v1334
    %1489 = vmatpush.msra.mxu0 %v1333
    %1490 = vmatpush.msra.mxu0 %v1332
    %1491 = vmatpush.msra.mxu0 %v1331
    %1492 = vmatmul.f32.gmra.mxu0 %v1263
    %v1493 = vpop.f32.mrf.mxu0
    %v1494 = vadd.f32 %v1474, %v1493
    %1495 = vdwg.mxu0
    %1496 = vmatpush.msra.mxu0 %v1362
    %1497 = vmatpush.msra.mxu0 %v1361
    %1498 = vmatpush.msra.mxu0 %v1360
    %1499 = vmatpush.msra.mxu0 %v1359
    %1500 = vmatpush.msra.mxu0 %v1358
    %1501 = vmatpush.msra.mxu0 %v1357
    %1502 = vmatpush.msra.mxu0 %v1356
    %1503 = vmatpush.msra.mxu0 %v1355
    %1504 = vmatpush.msra.mxu0 %v1354
    %1505 = vmatpush.msra.mxu0 %v1353
    %1506 = vmatpush.msra.mxu0 %v1352
    %1507 = vmatpush.msra.mxu0 %v1351
    %1508 = vmatpush.msra.mxu0 %v1350
    %1509 = vmatpush.msra.mxu0 %v1349
    %1510 = vmatpush.msra.mxu0 %v1348
    %1511 = vmatpush.msra.mxu0 %v1347
    %1512 = vmatmul.f32.gmra.mxu0 %v1264
    %v1513 = vpop.f32.mrf.mxu0
    %v1514 = vadd.f32 %v1494, %v1513
    %1515 = vdwg.mxu0
    %1516 = vmatpush.msra.mxu0 %v1378
    %1517 = vmatpush.msra.mxu0 %v1377
    %1518 = vmatpush.msra.mxu0 %v1376
    %1519 = vmatpush.msra.mxu0 %v1375
    %1520 = vmatpush.msra.mxu0 %v1374
    %1521 = vmatpush.msra.mxu0 %v1373
    %1522 = vmatpush.msra.mxu0 %v1372
    %1523 = vmatpush.msra.mxu0 %v1371
    %1524 = vmatpush.msra.mxu0 %v1370
    %1525 = vmatpush.msra.mxu0 %v1369
    %1526 = vmatpush.msra.mxu0 %v1368
    %1527 = vmatpush.msra.mxu0 %v1367
    %1528 = vmatpush.msra.mxu0 %v1366
    %1529 = vmatpush.msra.mxu0 %v1365
    %1530 = vmatpush.msra.mxu0 %v1364
    %1531 = vmatpush.msra.mxu0 %v1363
    %1532 = vmatmul.f32.gmra.mxu0 %v1265
    %v1533 = vpop.f32.mrf.mxu0
    %v1534 = vadd.f32 %v1514, %v1533
    %1535 = vdwg.mxu0
    %1536 = vmatpush.msra.mxu0 %v1394
    %1537 = vmatpush.msra.mxu0 %v1393
    %1538 = vmatpush.msra.mxu0 %v1392
    %1539 = vmatpush.msra.mxu0 %v1391
    %1540 = vmatpush.msra.mxu0 %v1390
    %1541 = vmatpush.msra.mxu0 %v1389
    %1542 = vmatpush.msra.mxu0 %v1388
    %1543 = vmatpush.msra.mxu0 %v1387
    %1544 = vmatpush.msra.mxu0 %v1386
    %1545 = vmatpush.msra.mxu0 %v1385
    %1546 = vmatpush.msra.mxu0 %v1384
    %1547 = vmatpush.msra.mxu0 %v1383
    %1548 = vmatpush.msra.mxu0 %v1382
    %1549 = vmatpush.msra.mxu0 %v1381
    %1550 = vmatpush.msra.mxu0 %v1380
    %1551 = vmatpush.msra.mxu0 %v1379
    %1552 = vmatmul.f32.gmra.mxu0 %v1266
    %v1553 = vpop.f32.mrf.mxu0
    %v1554 = vadd.f32 %v1534, %v1553
    %1555 = vdwg.mxu0
    %v1556 = vsub.f32 0.0, %v1554
    %v1557 = vmul.f32 %v1556, 1.442695
    %v1558 = vpow.pop %v1557
    %v1559 = vadd.f32 %v1558, 1.0
    %v1560 = vrcp.pop %v1559
    %v1561 = vmul.f32 %v1559, %v1560
    %v1562 = vsub.f32 1.0, %v1561
    %v1563 = vmul.f32 %v1560, %v1562
    %v1564 = vadd.f32 %v1560, %v1563
    %vm1565 = vweird.f32 %v1559
    %vm1566 = vweird.f32 %v1560
    %vm1567 = vmor %vm1565, %vm1566
    %v1568 = vsel %vm1567, %v1560, %v1564
    %v1569 = vand.u32 2147483647, %v1559
    %vm1570 = vcmp.eq.f32.partialorder %v1569, 8.507059e+37
    %v1571 = vand.u32 %v1559, 2147483648
    %v1572 = vor.u32 1.1754944e-38, %v1571
    %v1573 = vsel %vm1570, %v1572, %v1568
    %1574 = vst [vmem:[%s5] sm:$0x1] %v1573
    // Predicated region
    $region38: #{text_classifier_forward.1} parent=1 // pred_check
      _
    $region39: #{text_classifier_forward.1} parent=1 // pred_check_branch
      %1576 = sbr.rel (0) target = $region41
    $region40: #{text_classifier_forward.1} parent=1 // pred_region
      _
    $region41: #{text_classifier_forward.1} parent=1 // pred_fallthru
      _
    // Predicated region
    $region42: #{text_classifier_forward.1} parent=1 // pred_check
      _
    $region43: #{text_classifier_forward.1} parent=1 // pred_check_branch
      %1578 = sbr.rel (0) target = $region45
    $region44: #{text_classifier_forward.1} parent=1 // pred_region
      _
    $region45: #{text_classifier_forward.1} parent=1 // pred_fallthru
      _
    %1579 = vsyncpa [#allocation3], 1
    %1580 = vsyncpa [#allocation5], 1
    %1581 = vsyncpa [#allocation8], 1

</llo_original>
